<compile_context>
chip_gen: v5e
topology: v5e:2x2
jax: 0.10.0
libtpu: 0.0.40
codegen_flags: <defaults>
</compile_context>

<pallas_src>
import functools

import jax
import jax.numpy as jnp
from jax import lax
from jax.experimental import pallas as pl
from jax.experimental.pallas import tpu as pltpu

_TOPK_LANES = 128  # lane-padded width of the running top-k scratch buffer


def _round_up(v, m):
    return (v + m - 1) // m * m


def _pad_cast(a, shape, dtype):
    a = a.astype(dtype)
    pads = [(0, s - d) for s, d in zip(shape, a.shape)]
    if any(p for _, p in pads):
        a = jnp.pad(a, pads)
    return a


def _tpu_generation():
    """Best-effort TPU generation tag ('v5' / 'v6' / 'v7') or None."""
    try:
        kind = jax.devices()[0].device_kind.lower()
    except Exception:
        return None
    for tag in ("v7", "v6", "v5"):
        if tag in kind:
            return tag
    return None


def _invnet_kernel(x_ref, em_ref, cid_ref, bias_ref, tgt_ref, loss_ref,
                   acc_sc, topk_sc, *, inv_beta, knn, use_smooth):
    k = pl.program_id(1)

    @pl.when(k == 0)
    def _init():
        # acc_sc lanes: 0 = running max (-inf), 1 = running sum-exp (0),
        #               2 = target logit (0), 3 = unused.
        lane4 = lax.broadcasted_iota(jnp.int32, acc_sc.shape, 1)
        acc_sc[...] = jnp.where(lane4 == 0, -jnp.inf, 0.0).astype(acc_sc.dtype)
        topk_sc[...] = jnp.full(topk_sc.shape, -jnp.inf, topk_sc.dtype)

    x = x_ref[...]            # (b_tile, Fp)  bf16 or f32
    em = em_ref[...]          # (c_tile, Fp)  bf16 or f32
    tgt = tgt_ref[...]        # (b_tile, 1)   int32
    cid = cid_ref[...]        # (1, c_tile)   int32 global class ids
    bias = bias_ref[...]      # (1, c_tile)   f32: 0 valid, -inf padded column

    # ExemplarMemory.forward: inputs @ em.T, then / beta.  Contract over the
    # shared feature dim (no materialized transpose); f32 accumulation on the
    # MXU even when operands stream in as bf16.  Padded class columns get the
    # precomputed -inf bias instead of a per-step iota/compare/where mask.
    logits = lax.dot_general(
        x, em, dimension_numbers=(((1,), (1,)), ((), ())),
        preferred_element_type=jnp.float32)
    logits = logits * inv_beta + bias                         # (bt, ct)

    # Target logit: the target class lives in exactly one C tile.
    tmask = cid == tgt                                        # (bt, ct)
    tl_new = acc_sc[:, 2:3] + jnp.sum(jnp.where(tmask, logits, 0.0),
                                      axis=1, keepdims=True)

    if use_smooth:
        # Online top-k across class tiles.  The tile's top-knn values are
        # extracted with a strictly-decreasing threshold (no full-tile
        # rewrites of a `work` copy) and folded into the running top-knn set
        # by replacing its minimum.
        rt = topk_sc[...]                                     # (bt, 128)
        lane = lax.broadcasted_iota(jnp.int32, rt.shape, 1)
        slot = lane < knn                                     # live slots
        tile_max = None
        t = None
        for j in range(knn):
            cand = logits if j == 0 else jnp.where(logits < t, logits,
                                                   -jnp.inf)
            t = jnp.max(cand, axis=1, keepdims=True)          # (bt, 1)
            if j == 0:
                tile_max = t                    # reuse as tile max for LSE
            cur_min = jnp.min(jnp.where(slot, rt, jnp.inf), axis=1,
                              keepdims=True)
            pos = jnp.where(jnp.logical_and(slot, rt == cur_min), lane,
                            _TOPK_LANES)
            first_min = lane == jnp.min(pos, axis=1, keepdims=True)
            insert = jnp.logical_and(first_min, t > cur_min)
            rt = jnp.where(insert, jnp.broadcast_to(t, rt.shape), rt)
        topk_sc[...] = rt
    else:
        tile_max = jnp.max(logits, axis=1, keepdims=True)

    # Online log-sum-exp across class tiles.
    m_prev = acc_sc[:, 0:1]
    m_new = jnp.maximum(m_prev, tile_max)
    l_new = (acc_sc[:, 1:2] * jnp.exp(m_prev - m_new)
             + jnp.sum(jnp.exp(logits - m_new), axis=1, keepdims=True))
    acc_sc[:, 0:1] = m_new
    acc_sc[:, 1:2] = l_new
    acc_sc[:, 2:3] = tl_new

    @pl.when(k == pl.num_programs(1) - 1)
    def _finalize():
        lse = acc_sc[:, 0:1] + jnp.log(acc_sc[:, 1:2])
        tl = acc_sc[:, 2:3]
        logp_tgt = tl - lse
        if use_smooth:
            rt_f = topk_sc[...]
            lane_f = lax.broadcasted_iota(jnp.int32, rt_f.shape, 1)
            slot_f = lane_f < knn
            sum_topk = jnp.sum(jnp.where(slot_f, rt_f, 0.0), axis=1,
                               keepdims=True)
            kth = jnp.min(jnp.where(slot_f, rt_f, jnp.inf), axis=1,
                          keepdims=True)
            in_topk = (tl >= kth).astype(jnp.float32)
            # -sum_c w_c logp_c with w = 1/knn on top-knn, overwritten by 1.0
            # at the target: sum_{topk} logp = sum_topk_logits - knn * lse.
            sum_topk_logp = sum_topk - jnp.float32(knn) * lse
            row_loss = -((1.0 / knn) * (sum_topk_logp - in_topk * logp_tgt)
                         + logp_tgt)
        else:
            row_loss = -logp_tgt                    # standard cross entropy
        loss_ref[...] = row_loss


def invnet_forward(x, em, targets, *, beta=0.05, knn=6, epoch=6,
                   b_tile=None, c_tile=None, matmul_dtype=jnp.bfloat16):
    """Pallas implementation of InvNet.forward (returns scalar mean loss)."""
    B, F = x.shape
    C, F2 = em.shape
    assert F == F2
    use_smooth = (knn > 0) and (epoch is not None) and (epoch > 4)
    if use_smooth:
        assert 0 < knn <= min(C, _TOPK_LANES)

    comp_dtype = jnp.dtype(matmul_dtype if matmul_dtype is not None
                           else x.dtype)
    itemsize = comp_dtype.itemsize
    gen = _tpu_generation()

    Fp = _round_up(F, 128)

    # Batch tile: 256 cap by default (fills v6e's 256-wide MXU and doubles
    # arithmetic intensity vs 128), 128 on v5e, and at least two batch tiles
    # on v7x so both TensorCores get work on the "parallel" axis.
    if b_tile is None:
        if gen == "v7" and B > 8:
            b_tile = min(_round_up(-(-B // 2), 8), 256)
        elif gen == "v5":
            b_tile = min(_round_up(B, 8), 128)
        else:
            b_tile = min(_round_up(B, 8), 256)
    b_tile = _round_up(int(b_tile), 8)
    Bp = _round_up(B, b_tile)

    # Per-generation VMEM budget (well under physical: 128 MiB on v5e/v6e,
    # 64 MiB on v7x) and em-tile budget; the class tile is also bounded so the
    # compiler's f32 (b_tile, c_tile) logits temporaries fit.
    vmem_cap = {"v5": 100 << 20, "v6": 100 << 20, "v7": 56 << 20}.get(gen, 48 << 20)
    em_budget = {"v5": 12 << 20, "v6": 16 << 20, "v7": 10 << 20}.get(gen, 8 << 20)
    if c_tile is None:
        c_from_em = em_budget // (Fp * itemsize)
        c_from_logits = (vmem_cap // 3) // max(3 * b_tile * 4, 1)
        c_tile = min(c_from_em, c_from_logits)
    c_tile = _round_up(max(128, min(int(c_tile), _round_up(C, 128))), 128)
    Cp = _round_up(C, c_tile)
    n_ct = Cp // c_tile

    est = (2 * c_tile * Fp * itemsize        # em tile, double buffered
           + 2 * b_tile * Fp * itemsize      # x tile (double buffered)
           + 3 * b_tile * c_tile * 4         # f32 logits + top-k candidate temps
           + b_tile * (4 + _TOPK_LANES) * 4  # accumulators + running top-k
           + 4 * (b_tile + 2 * c_tile) * 4)  # targets / class ids / bias / loss
    if est + (2 << 20) > vmem_cap:
        raise ValueError(
            f"b_tile={b_tile}, c_tile={c_tile} need ~{est >> 20} MiB VMEM, "
            f"exceeding the {vmem_cap >> 20} MiB budget for this TPU generation")
    vmem_limit = int(min(vmem_cap, max(est + (4 << 20), 32 << 20)))

    xp = _pad_cast(x, (Bp, Fp), comp_dtype)
    emp = _pad_cast(em, (Cp, Fp), comp_dtype)
    tgtp = _pad_cast(targets.reshape(B, 1), (Bp, 1), jnp.int32)
    class_ids = jnp.arange(Cp, dtype=jnp.int32).reshape(1, Cp)
    pad_bias = jnp.where(class_ids < C, 0.0, -jnp.inf).astype(jnp.float32)

    kernel = functools.partial(
        _invnet_kernel, inv_beta=float(1.0 / beta), knn=int(knn),
        use_smooth=bool(use_smooth))

    row_losses = pl.pallas_call(
        kernel,
        out_shape=jax.ShapeDtypeStruct((Bp, 1), jnp.float32),
        grid_spec=pltpu.PrefetchScalarGridSpec(
            num_scalar_prefetch=0,
            grid=(Bp // b_tile, n_ct),
            in_specs=[
                pl.BlockSpec((b_tile, Fp), lambda i, k: (i, 0)),    # x
                pl.BlockSpec((c_tile, Fp), lambda i, k: (k, 0)),    # em (streamed)
                pl.BlockSpec((1, c_tile), lambda i, k: (0, k)),     # class ids
                pl.BlockSpec((1, c_tile), lambda i, k: (0, k)),     # pad bias
                pl.BlockSpec((b_tile, 1), lambda i, k: (i, 0)),     # targets
            ],
            out_specs=pl.BlockSpec((b_tile, 1), lambda i, k: (i, 0)),
            scratch_shapes=[
                pltpu.VMEM((b_tile, 4), jnp.float32),            # m / l / tl
                pltpu.VMEM((b_tile, _TOPK_LANES), jnp.float32),  # running top-k
            ]),
        compiler_params=pltpu.CompilerParams(
            dimension_semantics=("parallel", "arbitrary"),
            vmem_limit_bytes=vmem_limit),
    )(xp, emp, class_ids, pad_bias, tgtp)

    return jnp.mean(row_losses[:B, 0])


def _ref_forward(x, em, targets, *, beta=0.05, knn=6, epoch=6,
                 matmul_dtype=None):
    """Pure-JAX reference mirroring the PyTorch module."""
    B = x.shape[0]
    if matmul_dtype is not None:
        x = x.astype(matmul_dtype)
        em = em.astype(matmul_dtype)
    logits = jnp.dot(x, em.T, preferred_element_type=jnp.float32) / beta
    logp = jax.nn.log_softmax(logits, axis=1)
    if knn > 0 and epoch > 4:
        topk_idx = jnp.argsort(-logits, axis=1)[:, :knn]
        onehot = jnp.zeros_like(logits)
        onehot = onehot.at[jnp.arange(B)[:, None], topk_idx].set(1.0 / knn)
        onehot = onehot.at[jnp.arange(B), targets].set(1.0)
        return jnp.mean(-jnp.sum(onehot * logp, axis=1))
    return jnp.mean(-logp[jnp.arange(B), targets])


if __name__ == "__main__":
    B, FEAT, CLASSES = 8, 128, 1000   # CLASSES not a multiple of the C tile
    beta, knn = 0.05, 6

    key = jax.random.PRNGKey(0)
    kx, kem, kt = jax.random.split(key, 3)

    # The module initializes em = zeros(C, F); we use a deterministic
    # row-normalized random memory (the state after ExemplarMemory updates)
    # so the top-k selection is well defined.
    x = jax.random.normal(kx, (B, FEAT), dtype=jnp.float32)
    x = x / jnp.linalg.norm(x, axis=1, keepdims=True)
    em = jax.random.normal(kem, (CLASSES, FEAT), dtype=jnp.float32)
    em = em / jnp.linalg.norm(em, axis=1, keepdims=True)
    targets = jax.random.randint(kt, (B,), 0, CLASSES, dtype=jnp.int32)

    # 1) default path: bf16-streamed x/em (f32 MXU accumulation), smooth loss,
    #    generation-derived b_tile / c_tile; compared against a reference that
    #    applies the same bf16 input rounding.
    loss_bf16 = invnet_forward(x, em, targets, beta=beta, knn=knn, epoch=6)
    jax.block_until_ready(loss_bf16)
    ref_bf16 = _ref_forward(x, em, targets, beta=beta, knn=knn, epoch=6,
                            matmul_dtype=jnp.bfloat16)
    assert jnp.allclose(loss_bf16, ref_bf16, rtol=5e-3, atol=5e-3), (
        loss_bf16, ref_bf16)

    # 2) f32 streaming, 4 class tiles (last one padded), smooth-loss branch.
    loss_f32 = invnet_forward(x, em, targets, beta=beta, knn=knn, epoch=6,
                              c_tile=256, matmul_dtype=jnp.float32)
    jax.block_until_ready(loss_f32)
    ref_f32 = _ref_forward(x, em, targets, beta=beta, knn=knn, epoch=6)
    assert jnp.allclose(loss_f32, ref_f32, rtol=1e-3, atol=1e-3), (
        loss_f32, ref_f32)

    # 3) cross-entropy branch (epoch <= 4), f32.
    loss_ce = invnet_forward(x, em, targets, beta=beta, knn=knn, epoch=2,
                             c_tile=256, matmul_dtype=jnp.float32)
    jax.block_until_ready(loss_ce)
    ref_ce = _ref_forward(x, em, targets, beta=beta, knn=knn, epoch=2)
    assert jnp.allclose(loss_ce, ref_ce, rtol=1e-3, atol=1e-3), (loss_ce, ref_ce)

    print("KERNEL_OK")
</pallas_src>

<mosaic_0001>
module attributes {stable_mosaic.version = 11 : i64} {
  func.func @_invnet_kernel(%arg0: i32, %arg1: i32, %arg2: memref<8x128xbf16, #tpu.memory_space<vmem>>, %arg3: memref<1024x128xbf16, #tpu.memory_space<vmem>>, %arg4: memref<1x1024xi32, #tpu.memory_space<vmem>>, %arg5: memref<1x1024xf32, #tpu.memory_space<vmem>>, %arg6: memref<8x1xi32, #tpu.memory_space<vmem>>, %arg7: memref<8x1xf32, #tpu.memory_space<vmem>>, %arg8: memref<8x4xf32, #tpu.memory_space<vmem>>, %arg9: memref<8x128xf32, #tpu.memory_space<vmem>>) attributes {dimension_semantics = [#tpu.dimension_semantics<parallel>, #tpu.dimension_semantics<arbitrary>], iteration_bounds = array<i64: 1, 1>, scalar_prefetch = 0 : i64, scratch_operands = 2 : i64, tpu.core_type = #tpu.core_type<tc>, window_params = [{transform_indices = @transform_0, window_bounds = array<i64: 8, 128>}, {transform_indices = @transform_1, window_bounds = array<i64: 1024, 128>}, {transform_indices = @transform_2, window_bounds = array<i64: 1, 1024>}, {transform_indices = @transform_3, window_bounds = array<i64: 1, 1024>}, {transform_indices = @transform_4, window_bounds = array<i64: 8, 1>}, {transform_indices = @transform_5, window_bounds = array<i64: 8, 1>}]} {
    %c0_i32 = arith.constant 0 : i32
    %0 = arith.cmpi eq, %arg1, %c0_i32 : i32
    %1 = arith.extui %0 : i1 to i32
    %c0_i32_0 = arith.constant 0 : i32
    %2 = arith.cmpi ne, %1, %c0_i32_0 : i32
    scf.if %2 {
      %191 = tpu.iota {dimensions = array<i32: 1>} : vector<8x4xi32>
      %c0_i32_64 = arith.constant 0 : i32
      %192 = vector.broadcast %c0_i32_64 : i32 to vector<8x4xi32>
      %193 = arith.cmpi eq, %191, %192 : vector<8x4xi32>
      %cst_65 = arith.constant 0xFF800000 : f32
      %cst_66 = arith.constant 0.000000e+00 : f32
      %194 = vector.broadcast %cst_65 : f32 to vector<8x4xf32>
      %195 = vector.broadcast %cst_66 : f32 to vector<8x4xf32>
      %196 = arith.select %193, %194, %195 : vector<8x4xi1>, vector<8x4xf32>
      %c0_67 = arith.constant 0 : index
      %c0_68 = arith.constant 0 : index
      %197 = vector.load %arg8[%c0_67, %c0_68] : memref<8x4xf32, #tpu.memory_space<vmem>>, vector<8x4xf32>
      tpu.vector_store %arg8[%c0_67, %c0_68], %196 {strides = array<i32>} : memref<8x4xf32, #tpu.memory_space<vmem>>, vector<8x4xf32>,
      %cst_69 = arith.constant 0xFF800000 : f32
      %198 = vector.broadcast %cst_69 : f32 to vector<8x128xf32>
      %c0_70 = arith.constant 0 : index
      %c0_71 = arith.constant 0 : index
      %199 = vector.load %arg9[%c0_70, %c0_71] : memref<8x128xf32, #tpu.memory_space<vmem>>, vector<8x128xf32>
      tpu.vector_store %arg9[%c0_70, %c0_71], %198 {strides = array<i32>} : memref<8x128xf32, #tpu.memory_space<vmem>>, vector<8x128xf32>,
    } else {
    }
    %c0 = arith.constant 0 : index
    %c0_1 = arith.constant 0 : index
    %3 = vector.load %arg2[%c0, %c0_1] : memref<8x128xbf16, #tpu.memory_space<vmem>>, vector<8x128xbf16>
    %c0_2 = arith.constant 0 : index
    %c0_3 = arith.constant 0 : index
    %4 = vector.load %arg3[%c0_2, %c0_3] : memref<1024x128xbf16, #tpu.memory_space<vmem>>, vector<1024x128xbf16>
    %c0_4 = arith.constant 0 : index
    %c0_5 = arith.constant 0 : index
    %5 = vector.load %arg6[%c0_4, %c0_5] : memref<8x1xi32, #tpu.memory_space<vmem>>, vector<8x1xi32>
    %c0_6 = arith.constant 0 : index
    %c0_7 = arith.constant 0 : index
    %6 = vector.load %arg4[%c0_6, %c0_7] : memref<1x1024xi32, #tpu.memory_space<vmem>>, vector<1x1024xi32>
    %c0_8 = arith.constant 0 : index
    %c0_9 = arith.constant 0 : index
    %7 = vector.load %arg5[%c0_8, %c0_9] : memref<1x1024xf32, #tpu.memory_space<vmem>>, vector<1x1024xf32>
    %cst = arith.constant dense<0.000000e+00> : vector<8x1024xf32>
    %8 = tpu.matmul %3, %4, %cst {dimension_numbers = #tpu.dot_dimension_numbers<[1], [1], [0], [0], [0, 0, 1, 0], [], []>} : vector<8x128xbf16>, vector<1024x128xbf16>, vector<8x1024xf32> -> vector<8x1024xf32>
    %cst_10 = arith.constant 2.000000e+01 : f32
    %9 = vector.broadcast %cst_10 : f32 to vector<8x1024xf32>
    %10 = arith.mulf %8, %9 : vector<8x1024xf32>
    %11 = vector.broadcast %7 : vector<1x1024xf32> to vector<8x1024xf32>
    %12 = arith.addf %10, %11 : vector<8x1024xf32>
    %13 = vector.broadcast %6 : vector<1x1024xi32> to vector<8x1024xi32>
    %14 = vector.broadcast %5 : vector<8x1xi32> to vector<8x1024xi32>
    %15 = arith.cmpi eq, %13, %14 : vector<8x1024xi32>
    %c0_11 = arith.constant 0 : index
    %c2 = arith.constant 2 : index
    %16 = vector.load %arg8[%c0_11, %c2] : memref<8x4xf32, #tpu.memory_space<vmem>>, vector<8x1xf32>
    %cst_12 = arith.constant 0.000000e+00 : f32
    %17 = vector.broadcast %cst_12 : f32 to vector<8x1024xf32>
    %18 = arith.select %15, %12, %17 : vector<8x1024xi1>, vector<8x1024xf32>
    %cst_13 = arith.constant dense<0.000000e+00> : vector<8xf32>
    %19 = vector.multi_reduction <add>, %18, %cst_13 [1] : vector<8x1024xf32> to vector<8xf32>
    %20 = vector.shape_cast %19 : vector<8xf32> to vector<8x1xf32>
    %21 = arith.addf %16, %20 : vector<8x1xf32>
    %c0_14 = arith.constant 0 : index
    %c0_15 = arith.constant 0 : index
    %22 = vector.load %arg9[%c0_14, %c0_15] : memref<8x128xf32, #tpu.memory_space<vmem>>, vector<8x128xf32>
    %23 = tpu.iota {dimensions = array<i32: 1>} : vector<8x128xi32>
    %c6_i32 = arith.constant 6 : i32
    %24 = vector.broadcast %c6_i32 : i32 to vector<8x128xi32>
    %25 = arith.cmpi slt, %23, %24 : vector<8x128xi32>
    %cst_16 = arith.constant dense<0xFF800000> : vector<8xf32>
    %26 = vector.multi_reduction <maximumf>, %12, %cst_16 [1] : vector<8x1024xf32> to vector<8xf32>
    %27 = vector.shape_cast %26 : vector<8xf32> to vector<8x1xf32>
    %cst_17 = arith.constant 0x7F800000 : f32
    %28 = vector.broadcast %cst_17 : f32 to vector<8x128xf32>
    %29 = arith.select %25, %22, %28 : vector<8x128xi1>, vector<8x128xf32>
    %cst_18 = arith.constant dense<0x7F800000> : vector<8xf32>
    %30 = vector.multi_reduction <minimumf>, %29, %cst_18 [1] : vector<8x128xf32> to vector<8xf32>
    %31 = vector.shape_cast %30 : vector<8xf32> to vector<8x1xf32>
    %32 = vector.broadcast %31 : vector<8x1xf32> to vector<8x128xf32>
    %33 = arith.cmpf oeq, %22, %32 : vector<8x128xf32>
    %34 = arith.andi %25, %33 : vector<8x128xi1>
    %c128_i32 = arith.constant 128 : i32
    %35 = vector.broadcast %c128_i32 : i32 to vector<8x128xi32>
    %36 = arith.select %34, %23, %35 : vector<8x128xi1>, vector<8x128xi32>
    %cst_19 = arith.constant dense<2147483647> : vector<8xi32>
    %37 = vector.multi_reduction <minsi>, %36, %cst_19 [1] : vector<8x128xi32> to vector<8xi32>
    %38 = vector.shape_cast %37 : vector<8xi32> to vector<8x1xi32>
    %39 = vector.broadcast %38 : vector<8x1xi32> to vector<8x128xi32>
    %40 = arith.cmpi eq, %23, %39 : vector<8x128xi32>
    %41 = arith.cmpf ogt, %27, %31 : vector<8x1xf32>
    %42 = vector.broadcast %41 : vector<8x1xi1> to vector<8x128xi1>
    %43 = arith.andi %40, %42 : vector<8x128xi1>
    %44 = vector.shape_cast %27 : vector<8x1xf32> to vector<8x1xf32>
    %45 = vector.broadcast %44 : vector<8x1xf32> to vector<8x128xf32>
    %46 = arith.select %43, %45, %22 : vector<8x128xi1>, vector<8x128xf32>
    %47 = vector.broadcast %27 : vector<8x1xf32> to vector<8x1024xf32>
    %48 = arith.cmpf olt, %12, %47 : vector<8x1024xf32>
    %cst_20 = arith.constant 0xFF800000 : f32
    %49 = vector.broadcast %cst_20 : f32 to vector<8x1024xf32>
    %50 = arith.select %48, %12, %49 : vector<8x1024xi1>, vector<8x1024xf32>
    %cst_21 = arith.constant dense<0xFF800000> : vector<8xf32>
    %51 = vector.multi_reduction <maximumf>, %50, %cst_21 [1] : vector<8x1024xf32> to vector<8xf32>
    %52 = vector.shape_cast %51 : vector<8xf32> to vector<8x1xf32>
    %cst_22 = arith.constant 0x7F800000 : f32
    %53 = vector.broadcast %cst_22 : f32 to vector<8x128xf32>
    %54 = arith.select %25, %46, %53 : vector<8x128xi1>, vector<8x128xf32>
    %cst_23 = arith.constant dense<0x7F800000> : vector<8xf32>
    %55 = vector.multi_reduction <minimumf>, %54, %cst_23 [1] : vector<8x128xf32> to vector<8xf32>
    %56 = vector.shape_cast %55 : vector<8xf32> to vector<8x1xf32>
    %57 = vector.broadcast %56 : vector<8x1xf32> to vector<8x128xf32>
    %58 = arith.cmpf oeq, %46, %57 : vector<8x128xf32>
    %59 = arith.andi %25, %58 : vector<8x128xi1>
    %c128_i32_24 = arith.constant 128 : i32
    %60 = vector.broadcast %c128_i32_24 : i32 to vector<8x128xi32>
    %61 = arith.select %59, %23, %60 : vector<8x128xi1>, vector<8x128xi32>
    %cst_25 = arith.constant dense<2147483647> : vector<8xi32>
    %62 = vector.multi_reduction <minsi>, %61, %cst_25 [1] : vector<8x128xi32> to vector<8xi32>
    %63 = vector.shape_cast %62 : vector<8xi32> to vector<8x1xi32>
    %64 = vector.broadcast %63 : vector<8x1xi32> to vector<8x128xi32>
    %65 = arith.cmpi eq, %23, %64 : vector<8x128xi32>
    %66 = arith.cmpf ogt, %52, %56 : vector<8x1xf32>
    %67 = vector.broadcast %66 : vector<8x1xi1> to vector<8x128xi1>
    %68 = arith.andi %65, %67 : vector<8x128xi1>
    %69 = vector.shape_cast %52 : vector<8x1xf32> to vector<8x1xf32>
    %70 = vector.broadcast %69 : vector<8x1xf32> to vector<8x128xf32>
    %71 = arith.select %68, %70, %46 : vector<8x128xi1>, vector<8x128xf32>
    %72 = vector.broadcast %52 : vector<8x1xf32> to vector<8x1024xf32>
    %73 = arith.cmpf olt, %12, %72 : vector<8x1024xf32>
    %cst_26 = arith.constant 0xFF800000 : f32
    %74 = vector.broadcast %cst_26 : f32 to vector<8x1024xf32>
    %75 = arith.select %73, %12, %74 : vector<8x1024xi1>, vector<8x1024xf32>
    %cst_27 = arith.constant dense<0xFF800000> : vector<8xf32>
    %76 = vector.multi_reduction <maximumf>, %75, %cst_27 [1] : vector<8x1024xf32> to vector<8xf32>
    %77 = vector.shape_cast %76 : vector<8xf32> to vector<8x1xf32>
    %cst_28 = arith.constant 0x7F800000 : f32
    %78 = vector.broadcast %cst_28 : f32 to vector<8x128xf32>
    %79 = arith.select %25, %71, %78 : vector<8x128xi1>, vector<8x128xf32>
    %cst_29 = arith.constant dense<0x7F800000> : vector<8xf32>
    %80 = vector.multi_reduction <minimumf>, %79, %cst_29 [1] : vector<8x128xf32> to vector<8xf32>
    %81 = vector.shape_cast %80 : vector<8xf32> to vector<8x1xf32>
    %82 = vector.broadcast %81 : vector<8x1xf32> to vector<8x128xf32>
    %83 = arith.cmpf oeq, %71, %82 : vector<8x128xf32>
    %84 = arith.andi %25, %83 : vector<8x128xi1>
    %c128_i32_30 = arith.constant 128 : i32
    %85 = vector.broadcast %c128_i32_30 : i32 to vector<8x128xi32>
    %86 = arith.select %84, %23, %85 : vector<8x128xi1>, vector<8x128xi32>
    %cst_31 = arith.constant dense<2147483647> : vector<8xi32>
    %87 = vector.multi_reduction <minsi>, %86, %cst_31 [1] : vector<8x128xi32> to vector<8xi32>
    %88 = vector.shape_cast %87 : vector<8xi32> to vector<8x1xi32>
    %89 = vector.broadcast %88 : vector<8x1xi32> to vector<8x128xi32>
    %90 = arith.cmpi eq, %23, %89 : vector<8x128xi32>
    %91 = arith.cmpf ogt, %77, %81 : vector<8x1xf32>
    %92 = vector.broadcast %91 : vector<8x1xi1> to vector<8x128xi1>
    %93 = arith.andi %90, %92 : vector<8x128xi1>
    %94 = vector.shape_cast %77 : vector<8x1xf32> to vector<8x1xf32>
    %95 = vector.broadcast %94 : vector<8x1xf32> to vector<8x128xf32>
    %96 = arith.select %93, %95, %71 : vector<8x128xi1>, vector<8x128xf32>
    %97 = vector.broadcast %77 : vector<8x1xf32> to vector<8x1024xf32>
    %98 = arith.cmpf olt, %12, %97 : vector<8x1024xf32>
    %cst_32 = arith.constant 0xFF800000 : f32
    %99 = vector.broadcast %cst_32 : f32 to vector<8x1024xf32>
    %100 = arith.select %98, %12, %99 : vector<8x1024xi1>, vector<8x1024xf32>
    %cst_33 = arith.constant dense<0xFF800000> : vector<8xf32>
    %101 = vector.multi_reduction <maximumf>, %100, %cst_33 [1] : vector<8x1024xf32> to vector<8xf32>
    %102 = vector.shape_cast %101 : vector<8xf32> to vector<8x1xf32>
    %cst_34 = arith.constant 0x7F800000 : f32
    %103 = vector.broadcast %cst_34 : f32 to vector<8x128xf32>
    %104 = arith.select %25, %96, %103 : vector<8x128xi1>, vector<8x128xf32>
    %cst_35 = arith.constant dense<0x7F800000> : vector<8xf32>
    %105 = vector.multi_reduction <minimumf>, %104, %cst_35 [1] : vector<8x128xf32> to vector<8xf32>
    %106 = vector.shape_cast %105 : vector<8xf32> to vector<8x1xf32>
    %107 = vector.broadcast %106 : vector<8x1xf32> to vector<8x128xf32>
    %108 = arith.cmpf oeq, %96, %107 : vector<8x128xf32>
    %109 = arith.andi %25, %108 : vector<8x128xi1>
    %c128_i32_36 = arith.constant 128 : i32
    %110 = vector.broadcast %c128_i32_36 : i32 to vector<8x128xi32>
    %111 = arith.select %109, %23, %110 : vector<8x128xi1>, vector<8x128xi32>
    %cst_37 = arith.constant dense<2147483647> : vector<8xi32>
    %112 = vector.multi_reduction <minsi>, %111, %cst_37 [1] : vector<8x128xi32> to vector<8xi32>
    %113 = vector.shape_cast %112 : vector<8xi32> to vector<8x1xi32>
    %114 = vector.broadcast %113 : vector<8x1xi32> to vector<8x128xi32>
    %115 = arith.cmpi eq, %23, %114 : vector<8x128xi32>
    %116 = arith.cmpf ogt, %102, %106 : vector<8x1xf32>
    %117 = vector.broadcast %116 : vector<8x1xi1> to vector<8x128xi1>
    %118 = arith.andi %115, %117 : vector<8x128xi1>
    %119 = vector.shape_cast %102 : vector<8x1xf32> to vector<8x1xf32>
    %120 = vector.broadcast %119 : vector<8x1xf32> to vector<8x128xf32>
    %121 = arith.select %118, %120, %96 : vector<8x128xi1>, vector<8x128xf32>
    %122 = vector.broadcast %102 : vector<8x1xf32> to vector<8x1024xf32>
    %123 = arith.cmpf olt, %12, %122 : vector<8x1024xf32>
    %cst_38 = arith.constant 0xFF800000 : f32
    %124 = vector.broadcast %cst_38 : f32 to vector<8x1024xf32>
    %125 = arith.select %123, %12, %124 : vector<8x1024xi1>, vector<8x1024xf32>
    %cst_39 = arith.constant dense<0xFF800000> : vector<8xf32>
    %126 = vector.multi_reduction <maximumf>, %125, %cst_39 [1] : vector<8x1024xf32> to vector<8xf32>
    %127 = vector.shape_cast %126 : vector<8xf32> to vector<8x1xf32>
    %cst_40 = arith.constant 0x7F800000 : f32
    %128 = vector.broadcast %cst_40 : f32 to vector<8x128xf32>
    %129 = arith.select %25, %121, %128 : vector<8x128xi1>, vector<8x128xf32>
    %cst_41 = arith.constant dense<0x7F800000> : vector<8xf32>
    %130 = vector.multi_reduction <minimumf>, %129, %cst_41 [1] : vector<8x128xf32> to vector<8xf32>
    %131 = vector.shape_cast %130 : vector<8xf32> to vector<8x1xf32>
    %132 = vector.broadcast %131 : vector<8x1xf32> to vector<8x128xf32>
    %133 = arith.cmpf oeq, %121, %132 : vector<8x128xf32>
    %134 = arith.andi %25, %133 : vector<8x128xi1>
    %c128_i32_42 = arith.constant 128 : i32
    %135 = vector.broadcast %c128_i32_42 : i32 to vector<8x128xi32>
    %136 = arith.select %134, %23, %135 : vector<8x128xi1>, vector<8x128xi32>
    %cst_43 = arith.constant dense<2147483647> : vector<8xi32>
    %137 = vector.multi_reduction <minsi>, %136, %cst_43 [1] : vector<8x128xi32> to vector<8xi32>
    %138 = vector.shape_cast %137 : vector<8xi32> to vector<8x1xi32>
    %139 = vector.broadcast %138 : vector<8x1xi32> to vector<8x128xi32>
    %140 = arith.cmpi eq, %23, %139 : vector<8x128xi32>
    %141 = arith.cmpf ogt, %127, %131 : vector<8x1xf32>
    %142 = vector.broadcast %141 : vector<8x1xi1> to vector<8x128xi1>
    %143 = arith.andi %140, %142 : vector<8x128xi1>
    %144 = vector.shape_cast %127 : vector<8x1xf32> to vector<8x1xf32>
    %145 = vector.broadcast %144 : vector<8x1xf32> to vector<8x128xf32>
    %146 = arith.select %143, %145, %121 : vector<8x128xi1>, vector<8x128xf32>
    %147 = vector.broadcast %127 : vector<8x1xf32> to vector<8x1024xf32>
    %148 = arith.cmpf olt, %12, %147 : vector<8x1024xf32>
    %cst_44 = arith.constant 0xFF800000 : f32
    %149 = vector.broadcast %cst_44 : f32 to vector<8x1024xf32>
    %150 = arith.select %148, %12, %149 : vector<8x1024xi1>, vector<8x1024xf32>
    %cst_45 = arith.constant dense<0xFF800000> : vector<8xf32>
    %151 = vector.multi_reduction <maximumf>, %150, %cst_45 [1] : vector<8x1024xf32> to vector<8xf32>
    %152 = vector.shape_cast %151 : vector<8xf32> to vector<8x1xf32>
    %cst_46 = arith.constant 0x7F800000 : f32
    %153 = vector.broadcast %cst_46 : f32 to vector<8x128xf32>
    %154 = arith.select %25, %146, %153 : vector<8x128xi1>, vector<8x128xf32>
    %cst_47 = arith.constant dense<0x7F800000> : vector<8xf32>
    %155 = vector.multi_reduction <minimumf>, %154, %cst_47 [1] : vector<8x128xf32> to vector<8xf32>
    %156 = vector.shape_cast %155 : vector<8xf32> to vector<8x1xf32>
    %157 = vector.broadcast %156 : vector<8x1xf32> to vector<8x128xf32>
    %158 = arith.cmpf oeq, %146, %157 : vector<8x128xf32>
    %159 = arith.andi %25, %158 : vector<8x128xi1>
    %c128_i32_48 = arith.constant 128 : i32
    %160 = vector.broadcast %c128_i32_48 : i32 to vector<8x128xi32>
    %161 = arith.select %159, %23, %160 : vector<8x128xi1>, vector<8x128xi32>
    %cst_49 = arith.constant dense<2147483647> : vector<8xi32>
    %162 = vector.multi_reduction <minsi>, %161, %cst_49 [1] : vector<8x128xi32> to vector<8xi32>
    %163 = vector.shape_cast %162 : vector<8xi32> to vector<8x1xi32>
    %164 = vector.broadcast %163 : vector<8x1xi32> to vector<8x128xi32>
    %165 = arith.cmpi eq, %23, %164 : vector<8x128xi32>
    %166 = arith.cmpf ogt, %152, %156 : vector<8x1xf32>
    %167 = vector.broadcast %166 : vector<8x1xi1> to vector<8x128xi1>
    %168 = arith.andi %165, %167 : vector<8x128xi1>
    %169 = vector.shape_cast %152 : vector<8x1xf32> to vector<8x1xf32>
    %170 = vector.broadcast %169 : vector<8x1xf32> to vector<8x128xf32>
    %171 = arith.select %168, %170, %146 : vector<8x128xi1>, vector<8x128xf32>
    %c0_50 = arith.constant 0 : index
    %c0_51 = arith.constant 0 : index
    %172 = vector.load %arg9[%c0_50, %c0_51] : memref<8x128xf32, #tpu.memory_space<vmem>>, vector<8x128xf32>
    tpu.vector_store %arg9[%c0_50, %c0_51], %171 {strides = array<i32>} : memref<8x128xf32, #tpu.memory_space<vmem>>, vector<8x128xf32>,
    %c0_52 = arith.constant 0 : index
    %c0_53 = arith.constant 0 : index
    %173 = vector.load %arg8[%c0_52, %c0_53] : memref<8x4xf32, #tpu.memory_space<vmem>>, vector<8x1xf32>
    %174 = arith.maximumf %173, %27 : vector<8x1xf32>
    %c0_54 = arith.constant 0 : index
    %c1 = arith.constant 1 : index
    %175 = vector.load %arg8[%c0_54, %c1] : memref<8x4xf32, #tpu.memory_space<vmem>>, vector<8x1xf32>
    %176 = arith.subf %173, %174 : vector<8x1xf32>
    %177 = math.exp %176 : vector<8x1xf32>
    %178 = arith.mulf %175, %177 : vector<8x1xf32>
    %179 = vector.broadcast %174 : vector<8x1xf32> to vector<8x1024xf32>
    %180 = arith.subf %12, %179 : vector<8x1024xf32>
    %181 = math.exp %180 : vector<8x1024xf32>
    %cst_55 = arith.constant dense<0.000000e+00> : vector<8xf32>
    %182 = vector.multi_reduction <add>, %181, %cst_55 [1] : vector<8x1024xf32> to vector<8xf32>
    %183 = vector.shape_cast %182 : vector<8xf32> to vector<8x1xf32>
    %184 = arith.addf %178, %183 : vector<8x1xf32>
    %c0_56 = arith.constant 0 : index
    %c0_57 = arith.constant 0 : index
    %185 = vector.load %arg8[%c0_56, %c0_57] : memref<8x4xf32, #tpu.memory_space<vmem>>, vector<8x1xf32>
    tpu.vector_store %arg8[%c0_56, %c0_57], %174 {strides = array<i32>} : memref<8x4xf32, #tpu.memory_space<vmem>>, vector<8x1xf32>,
    %c0_58 = arith.constant 0 : index
    %c1_59 = arith.constant 1 : index
    %186 = vector.load %arg8[%c0_58, %c1_59] : memref<8x4xf32, #tpu.memory_space<vmem>>, vector<8x1xf32>
    tpu.vector_store %arg8[%c0_58, %c1_59], %184 {strides = array<i32>} : memref<8x4xf32, #tpu.memory_space<vmem>>, vector<8x1xf32>,
    %c0_60 = arith.constant 0 : index
    %c2_61 = arith.constant 2 : index
    %187 = vector.load %arg8[%c0_60, %c2_61] : memref<8x4xf32, #tpu.memory_space<vmem>>, vector<8x1xf32>
    tpu.vector_store %arg8[%c0_60, %c2_61], %21 {strides = array<i32>} : memref<8x4xf32, #tpu.memory_space<vmem>>, vector<8x1xf32>,
    %c0_i32_62 = arith.constant 0 : i32
    %188 = arith.cmpi eq, %arg1, %c0_i32_62 : i32
    %189 = arith.extui %188 : i1 to i32
    %c0_i32_63 = arith.constant 0 : i32
    %190 = arith.cmpi ne, %189, %c0_i32_63 : i32
    scf.if %190 {
      %c0_64 = arith.constant 0 : index
      %c0_65 = arith.constant 0 : index
      %191 = vector.load %arg8[%c0_64, %c0_65] : memref<8x4xf32, #tpu.memory_space<vmem>>, vector<8x1xf32>
      %c0_66 = arith.constant 0 : index
      %c1_67 = arith.constant 1 : index
      %192 = vector.load %arg8[%c0_66, %c1_67] : memref<8x4xf32, #tpu.memory_space<vmem>>, vector<8x1xf32>
      %193 = math.log %192 : vector<8x1xf32>
      %194 = arith.addf %191, %193 : vector<8x1xf32>
      %c0_68 = arith.constant 0 : index
      %c2_69 = arith.constant 2 : index
      %195 = vector.load %arg8[%c0_68, %c2_69] : memref<8x4xf32, #tpu.memory_space<vmem>>, vector<8x1xf32>
      %196 = arith.subf %195, %194 : vector<8x1xf32>
      %c0_70 = arith.constant 0 : index
      %c0_71 = arith.constant 0 : index
      %197 = vector.load %arg9[%c0_70, %c0_71] : memref<8x128xf32, #tpu.memory_space<vmem>>, vector<8x128xf32>
      %198 = tpu.iota {dimensions = array<i32: 1>} : vector<8x128xi32>
      %c6_i32_72 = arith.constant 6 : i32
      %199 = vector.broadcast %c6_i32_72 : i32 to vector<8x128xi32>
      %200 = arith.cmpi slt, %198, %199 : vector<8x128xi32>
      %cst_73 = arith.constant 0.000000e+00 : f32
      %201 = vector.broadcast %cst_73 : f32 to vector<8x128xf32>
      %202 = arith.select %200, %197, %201 : vector<8x128xi1>, vector<8x128xf32>
      %cst_74 = arith.constant dense<0.000000e+00> : vector<8xf32>
      %203 = vector.multi_reduction <add>, %202, %cst_74 [1] : vector<8x128xf32> to vector<8xf32>
      %204 = vector.shape_cast %203 : vector<8xf32> to vector<8x1xf32>
      %cst_75 = arith.constant 0x7F800000 : f32
      %205 = vector.broadcast %cst_75 : f32 to vector<8x128xf32>
      %206 = arith.select %200, %197, %205 : vector<8x128xi1>, vector<8x128xf32>
      %cst_76 = arith.constant dense<0x7F800000> : vector<8xf32>
      %207 = vector.multi_reduction <minimumf>, %206, %cst_76 [1] : vector<8x128xf32> to vector<8xf32>
      %208 = vector.shape_cast %207 : vector<8xf32> to vector<8x1xf32>
      %209 = arith.cmpf oge, %195, %208 : vector<8x1xf32>
      %210 = arith.extui %209 : vector<8x1xi1> to vector<8x1xi32>
      %211 = arith.sitofp %210 : vector<8x1xi32> to vector<8x1xf32>
      %cst_77 = arith.constant 6.000000e+00 : f32
      %212 = vector.broadcast %cst_77 : f32 to vector<8x1xf32>
      %213 = arith.mulf %212, %194 : vector<8x1xf32>
      %214 = arith.subf %204, %213 : vector<8x1xf32>
      %215 = arith.mulf %211, %196 : vector<8x1xf32>
      %216 = arith.subf %214, %215 : vector<8x1xf32>
      %cst_78 = arith.constant 0.166666672 : f32
      %217 = vector.broadcast %cst_78 : f32 to vector<8x1xf32>
      %218 = arith.mulf %217, %216 : vector<8x1xf32>
      %219 = arith.addf %218, %196 : vector<8x1xf32>
      %cst_79 = arith.constant 0.000000e+00 : f32
      %220 = vector.broadcast %cst_79 : f32 to vector<8x1xf32>
      %221 = arith.subf %220, %219 : vector<8x1xf32>
      %c0_80 = arith.constant 0 : index
      %c0_81 = arith.constant 0 : index
      %222 = vector.load %arg7[%c0_80, %c0_81] : memref<8x1xf32, #tpu.memory_space<vmem>>, vector<8x1xf32>
      tpu.vector_store %arg7[%c0_80, %c0_81], %221 {strides = array<i32>} : memref<8x1xf32, #tpu.memory_space<vmem>>, vector<8x1xf32>,
    } else {
    }
    return
  }
  func.func @transform_0(%arg0: i32, %arg1: i32) -> (i32, i32) {
    %c0_i32 = arith.constant 0 : i32
    %c0_i32_0 = arith.constant 0 : i32
    return %arg0, %c0_i32 : i32, i32
  }
  func.func @transform_1(%arg0: i32, %arg1: i32) -> (i32, i32) {
    %c0_i32 = arith.constant 0 : i32
    %c0_i32_0 = arith.constant 0 : i32
    return %arg1, %c0_i32 : i32, i32
  }
  func.func @transform_2(%arg0: i32, %arg1: i32) -> (i32, i32) {
    %c0_i32 = arith.constant 0 : i32
    %c0_i32_0 = arith.constant 0 : i32
    return %c0_i32, %arg1 : i32, i32
  }
  func.func @transform_3(%arg0: i32, %arg1: i32) -> (i32, i32) {
    %c0_i32 = arith.constant 0 : i32
    %c0_i32_0 = arith.constant 0 : i32
    return %c0_i32, %arg1 : i32, i32
  }
  func.func @transform_4(%arg0: i32, %arg1: i32) -> (i32, i32) {
    %c0_i32 = arith.constant 0 : i32
    %c0_i32_0 = arith.constant 0 : i32
    return %arg0, %c0_i32 : i32, i32
  }
  func.func @transform_5(%arg0: i32, %arg1: i32) -> (i32, i32) {
    %c0_i32 = arith.constant 0 : i32
    %c0_i32_0 = arith.constant 0 : i32
    return %arg0, %c0_i32 : i32, i32
  }
}

</mosaic_0001>

<llo_original>
// kernel: tpu_custom_call.1
$region0: #{tpu_custom_call.1}
  #allocation0 [shape = 'u32[]', space=smem, size = 0x4, offset = 0x4, fixed_abs, tag = 'smem constant byte address 0x4 - core index']
  #allocation1 [shape = 'u32[72,128]{1,0:T(1,128)}', space=vmem, size = 0x9000, scoped, tag = 'internal scratch']
  #allocation2 [shape = 'f32[8,4]{1,0:T(8,128)}', space=vmem, size = 0x1000, scoped, tag = 'scratch operand']
  #allocation3 [shape = 'f32[8,128]{1,0:T(8,128)}', space=vmem, size = 0x1000, scoped, tag = 'scratch operand']
  %s0 = inlined_call_operand.hbm [shape: bf16[8,128], index: 0, kind: input, shape index: {}]
  %s1 = inlined_call_operand.hbm [shape: bf16[1024,128], index: 1, kind: input, shape index: {}]
  %s2 = inlined_call_operand.vmem [shape: s32[1,1024], index: 2, kind: input, shape index: {}]
  %s3 = inlined_call_operand.hbm [shape: f32[1,1024], index: 3, kind: input, shape index: {}]
  %s4 = inlined_call_operand.vmem [shape: s32[8,1], index: 4, kind: input, shape index: {}]
  %s5 = inlined_call_operand.vmem [shape: f32[8,1], index: 5, kind: output, shape index: {}]
  %s6 = sld [smem:[#allocation0]]
  $region50: #{tpu_custom_call.1} parent=0
    _
  %s8 = ssub.s32 1, %s6
  %s9 = scalar_select 0, %s8, %s6
  $region1: #{tpu_custom_call.1} parent=0
    #allocation4 [shape = 'u8[2048]{0}', space=vmem, size = 0x800, scoped, tag = 'input window, operand 0, single buffered']
    #allocation5 [shape = 's32[1]{0}', space=sflag, size = 0x4, scoped, tag = 'scoped memory for tpu_custom_call.1']
    #allocation6 [shape = 'u8[262144]{0}', space=vmem, size = 0x40000, scoped, tag = 'input window, operand 1, single buffered']
    #allocation7 [shape = 's32[1]{0}', space=sflag, size = 0x4, scoped, tag = 'scoped memory for tpu_custom_call.1']
    #allocation8 [shape = 'u8[4096]{0}', space=vmem, size = 0x1000, scoped, tag = 'input window, operand 3, single buffered']
    %10 = vsyncpa [#allocation5], 0
    %11 = vsyncpa [#allocation7], 0
    // Predicated region
    $region2: #{tpu_custom_call.1} parent=1 // pred_check
      _
    $region3: #{tpu_custom_call.1} parent=1 // pred_check_branch
      %13 = sbr.rel (0) target = $region5
    $region4: #{tpu_custom_call.1} parent=1 // pred_region
      %15 = vsyncadd [#allocation5], 0
      %s17 = sshll.u32 %s0, 4
      %s18 = int_to_ptr.hbm [resolvable:$true] %s17
      %s19 = sshll.u32 [#allocation4], 4
      %s20 = int_to_ptr.vmem [resolvable:$true] %s19
      %22 = dma.hbm_to_vmem [thread:$0]  %s18, 64, %s20, [#allocation5]
    $region5: #{tpu_custom_call.1} parent=1 // pred_fallthru
      _
    // Predicated region
    $region6: #{tpu_custom_call.1} parent=1 // pred_check
      _
    $region7: #{tpu_custom_call.1} parent=1 // pred_check_branch
      %24 = sbr.rel (0) target = $region9
    $region8: #{tpu_custom_call.1} parent=1 // pred_region
      %26 = vsyncadd [#allocation7], 0
      %s27 = sshll.u32 %s1, 4
      %s28 = int_to_ptr.hbm [resolvable:$true] %s27
      %s29 = sshll.u32 [#allocation6], 4
      %s30 = int_to_ptr.vmem [resolvable:$true] %s29
      %35 = dma.hbm_to_vmem [thread:$0]  %s28, 8192, %s30, [#allocation7], 64, 64, 4
    $region9: #{tpu_custom_call.1} parent=1 // pred_fallthru
      _
    // Predicated region
    $region10: #{tpu_custom_call.1} parent=1 // pred_check
      _
    $region11: #{tpu_custom_call.1} parent=1 // pred_check_branch
      %37 = sbr.rel (0) target = $region13
    $region12: #{tpu_custom_call.1} parent=1 // pred_region
      _
    $region13: #{tpu_custom_call.1} parent=1 // pred_fallthru
      _
    // Predicated region
    $region14: #{tpu_custom_call.1} parent=1 // pred_check
      _
    $region15: #{tpu_custom_call.1} parent=1 // pred_check_branch
      %39 = sbr.rel (0) target = $region17
    $region16: #{tpu_custom_call.1} parent=1 // pred_region
      %41 = vsyncadd [#allocation7], 0
      %s43 = sshll.u32 %s3, 4
      %s44 = int_to_ptr.hbm [resolvable:$true] %s43
      %s45 = sshll.u32 [#allocation8], 4
      %s46 = int_to_ptr.vmem [resolvable:$true] %s45
      %48 = dma.hbm_to_vmem [thread:$0]  %s44, 128, %s46, [#allocation7]
    $region17: #{tpu_custom_call.1} parent=1 // pred_fallthru
      _
    // Predicated region
    $region18: #{tpu_custom_call.1} parent=1 // pred_check
      _
    $region19: #{tpu_custom_call.1} parent=1 // pred_check_branch
      %50 = sbr.rel (0) target = $region21
    $region20: #{tpu_custom_call.1} parent=1 // pred_region
      _
    $region21: #{tpu_custom_call.1} parent=1 // pred_fallthru
      _
    // Predicated region
    $region22: #{tpu_custom_call.1} parent=1 // pred_check
      _
    $region23: #{tpu_custom_call.1} parent=1 // pred_check_branch
      %52 = sbr.rel (0) target = $region25
    $region24: #{tpu_custom_call.1} parent=1 // pred_region
      %54 = dma.done [#allocation5], 64
    $region25: #{tpu_custom_call.1} parent=1 // pred_fallthru
      _
    // Predicated region
    $region26: #{tpu_custom_call.1} parent=1 // pred_check
      _
    $region27: #{tpu_custom_call.1} parent=1 // pred_check_branch
      %56 = sbr.rel (0) target = $region29
    $region28: #{tpu_custom_call.1} parent=1 // pred_region
      %58 = dma.done [#allocation7], 8192
    $region29: #{tpu_custom_call.1} parent=1 // pred_fallthru
      _
    // Predicated region
    $region30: #{tpu_custom_call.1} parent=1 // pred_check
      _
    $region31: #{tpu_custom_call.1} parent=1 // pred_check_branch
      %60 = sbr.rel (0) target = $region33
    $region32: #{tpu_custom_call.1} parent=1 // pred_region
      %62 = dma.done [#allocation7], 128
    $region33: #{tpu_custom_call.1} parent=1 // pred_fallthru
      _
    %p63 = scmp.eq.s32.totalorder 0, 0
    // Predicated region
    $region34: #{tpu_custom_call.1} parent=1 // pred_check
      %p64 = pneg %p63
    $region35: #{tpu_custom_call.1} parent=1 // pred_check_branch
      %66 = sbr.rel (%p64) target = $region37
    $region36: #{tpu_custom_call.1} parent=1 // pred_region
      %v67 = vlaneseq
      %v68 = vand.u32 %v67, 127
      %vm69 = vcmp.eq.s32.totalorder %v68, 0
      %v70 = vsel %vm69, -inf, 0.0
      %vm71 = vcmask 31744
      %72 = vst.msk [vmem:[#allocation2] sm:$0xff] %vm71, %v70
      %73 = vst [vmem:[#allocation3] sm:$0xff] -inf
    $region37: #{tpu_custom_call.1} parent=1 // pred_fallthru
      _
    %v74 = vld [vmem:[#allocation4] sm:$0xf]
    %v75 = vld [vmem:[#allocation6] sm:$0xf]
    %v76 = vld [vmem:[#allocation6 + $0x4] sm:$0xf]
    %v77 = vld [vmem:[#allocation6 + $0x8] sm:$0xf]
    %v78 = vld [vmem:[#allocation6 + $0xc] sm:$0xf]
    %v79 = vld [vmem:[#allocation6 + $0x10] sm:$0xf]
    %v80 = vld [vmem:[#allocation6 + $0x14] sm:$0xf]
    %v81 = vld [vmem:[#allocation6 + $0x18] sm:$0xf]
    %v82 = vld [vmem:[#allocation6 + $0x1c] sm:$0xf]
    %v83 = vld [vmem:[#allocation6 + $0x20] sm:$0xf]
    %v84 = vld [vmem:[#allocation6 + $0x24] sm:$0xf]
    %v85 = vld [vmem:[#allocation6 + $0x28] sm:$0xf]
    %v86 = vld [vmem:[#allocation6 + $0x2c] sm:$0xf]
    %v87 = vld [vmem:[#allocation6 + $0x30] sm:$0xf]
    %v88 = vld [vmem:[#allocation6 + $0x34] sm:$0xf]
    %v89 = vld [vmem:[#allocation6 + $0x38] sm:$0xf]
    %v90 = vld [vmem:[#allocation6 + $0x3c] sm:$0xf]
    %v91 = vld [vmem:[#allocation6 + $0x40] sm:$0xf]
    %v92 = vld [vmem:[#allocation6 + $0x44] sm:$0xf]
    %v93 = vld [vmem:[#allocation6 + $0x48] sm:$0xf]
    %v94 = vld [vmem:[#allocation6 + $0x4c] sm:$0xf]
    %v95 = vld [vmem:[#allocation6 + $0x50] sm:$0xf]
    %v96 = vld [vmem:[#allocation6 + $0x54] sm:$0xf]
    %v97 = vld [vmem:[#allocation6 + $0x58] sm:$0xf]
    %v98 = vld [vmem:[#allocation6 + $0x5c] sm:$0xf]
    %v99 = vld [vmem:[#allocation6 + $0x60] sm:$0xf]
    %v100 = vld [vmem:[#allocation6 + $0x64] sm:$0xf]
    %v101 = vld [vmem:[#allocation6 + $0x68] sm:$0xf]
    %v102 = vld [vmem:[#allocation6 + $0x6c] sm:$0xf]
    %v103 = vld [vmem:[#allocation6 + $0x70] sm:$0xf]
    %v104 = vld [vmem:[#allocation6 + $0x74] sm:$0xf]
    %v105 = vld [vmem:[#allocation6 + $0x78] sm:$0xf]
    %v106 = vld [vmem:[#allocation6 + $0x7c] sm:$0xf]
    %v107 = vld [vmem:[#allocation6 + $0x80] sm:$0xf]
    %v108 = vld [vmem:[#allocation6 + $0x84] sm:$0xf]
    %v109 = vld [vmem:[#allocation6 + $0x88] sm:$0xf]
    %v110 = vld [vmem:[#allocation6 + $0x8c] sm:$0xf]
    %v111 = vld [vmem:[#allocation6 + $0x90] sm:$0xf]
    %v112 = vld [vmem:[#allocation6 + $0x94] sm:$0xf]
    %v113 = vld [vmem:[#allocation6 + $0x98] sm:$0xf]
    %v114 = vld [vmem:[#allocation6 + $0x9c] sm:$0xf]
    %v115 = vld [vmem:[#allocation6 + $0xa0] sm:$0xf]
    %v116 = vld [vmem:[#allocation6 + $0xa4] sm:$0xf]
    %v117 = vld [vmem:[#allocation6 + $0xa8] sm:$0xf]
    %v118 = vld [vmem:[#allocation6 + $0xac] sm:$0xf]
    %v119 = vld [vmem:[#allocation6 + $0xb0] sm:$0xf]
    %v120 = vld [vmem:[#allocation6 + $0xb4] sm:$0xf]
    %v121 = vld [vmem:[#allocation6 + $0xb8] sm:$0xf]
    %v122 = vld [vmem:[#allocation6 + $0xbc] sm:$0xf]
    %v123 = vld [vmem:[#allocation6 + $0xc0] sm:$0xf]
    %v124 = vld [vmem:[#allocation6 + $0xc4] sm:$0xf]
    %v125 = vld [vmem:[#allocation6 + $0xc8] sm:$0xf]
    %v126 = vld [vmem:[#allocation6 + $0xcc] sm:$0xf]
    %v127 = vld [vmem:[#allocation6 + $0xd0] sm:$0xf]
    %v128 = vld [vmem:[#allocation6 + $0xd4] sm:$0xf]
    %v129 = vld [vmem:[#allocation6 + $0xd8] sm:$0xf]
    %v130 = vld [vmem:[#allocation6 + $0xdc] sm:$0xf]
    %v131 = vld [vmem:[#allocation6 + $0xe0] sm:$0xf]
    %v132 = vld [vmem:[#allocation6 + $0xe4] sm:$0xf]
    %v133 = vld [vmem:[#allocation6 + $0xe8] sm:$0xf]
    %v134 = vld [vmem:[#allocation6 + $0xec] sm:$0xf]
    %v135 = vld [vmem:[#allocation6 + $0xf0] sm:$0xf]
    %v136 = vld [vmem:[#allocation6 + $0xf4] sm:$0xf]
    %v137 = vld [vmem:[#allocation6 + $0xf8] sm:$0xf]
    %v138 = vld [vmem:[#allocation6 + $0xfc] sm:$0xf]
    %v139 = vld [vmem:[#allocation6 + $0x100] sm:$0xf]
    %v140 = vld [vmem:[#allocation6 + $0x104] sm:$0xf]
    %v141 = vld [vmem:[#allocation6 + $0x108] sm:$0xf]
    %v142 = vld [vmem:[#allocation6 + $0x10c] sm:$0xf]
    %v143 = vld [vmem:[#allocation6 + $0x110] sm:$0xf]
    %v144 = vld [vmem:[#allocation6 + $0x114] sm:$0xf]
    %v145 = vld [vmem:[#allocation6 + $0x118] sm:$0xf]
    %v146 = vld [vmem:[#allocation6 + $0x11c] sm:$0xf]
    %v147 = vld [vmem:[#allocation6 + $0x120] sm:$0xf]
    %v148 = vld [vmem:[#allocation6 + $0x124] sm:$0xf]
    %v149 = vld [vmem:[#allocation6 + $0x128] sm:$0xf]
    %v150 = vld [vmem:[#allocation6 + $0x12c] sm:$0xf]
    %v151 = vld [vmem:[#allocation6 + $0x130] sm:$0xf]
    %v152 = vld [vmem:[#allocation6 + $0x134] sm:$0xf]
    %v153 = vld [vmem:[#allocation6 + $0x138] sm:$0xf]
    %v154 = vld [vmem:[#allocation6 + $0x13c] sm:$0xf]
    %v155 = vld [vmem:[#allocation6 + $0x140] sm:$0xf]
    %v156 = vld [vmem:[#allocation6 + $0x144] sm:$0xf]
    %v157 = vld [vmem:[#allocation6 + $0x148] sm:$0xf]
    %v158 = vld [vmem:[#allocation6 + $0x14c] sm:$0xf]
    %v159 = vld [vmem:[#allocation6 + $0x150] sm:$0xf]
    %v160 = vld [vmem:[#allocation6 + $0x154] sm:$0xf]
    %v161 = vld [vmem:[#allocation6 + $0x158] sm:$0xf]
    %v162 = vld [vmem:[#allocation6 + $0x15c] sm:$0xf]
    %v163 = vld [vmem:[#allocation6 + $0x160] sm:$0xf]
    %v164 = vld [vmem:[#allocation6 + $0x164] sm:$0xf]
    %v165 = vld [vmem:[#allocation6 + $0x168] sm:$0xf]
    %v166 = vld [vmem:[#allocation6 + $0x16c] sm:$0xf]
    %v167 = vld [vmem:[#allocation6 + $0x170] sm:$0xf]
    %v168 = vld [vmem:[#allocation6 + $0x174] sm:$0xf]
    %v169 = vld [vmem:[#allocation6 + $0x178] sm:$0xf]
    %v170 = vld [vmem:[#allocation6 + $0x17c] sm:$0xf]
    %v171 = vld [vmem:[#allocation6 + $0x180] sm:$0xf]
    %v172 = vld [vmem:[#allocation6 + $0x184] sm:$0xf]
    %v173 = vld [vmem:[#allocation6 + $0x188] sm:$0xf]
    %v174 = vld [vmem:[#allocation6 + $0x18c] sm:$0xf]
    %v175 = vld [vmem:[#allocation6 + $0x190] sm:$0xf]
    %v176 = vld [vmem:[#allocation6 + $0x194] sm:$0xf]
    %v177 = vld [vmem:[#allocation6 + $0x198] sm:$0xf]
    %v178 = vld [vmem:[#allocation6 + $0x19c] sm:$0xf]
    %v179 = vld [vmem:[#allocation6 + $0x1a0] sm:$0xf]
    %v180 = vld [vmem:[#allocation6 + $0x1a4] sm:$0xf]
    %v181 = vld [vmem:[#allocation6 + $0x1a8] sm:$0xf]
    %v182 = vld [vmem:[#allocation6 + $0x1ac] sm:$0xf]
    %v183 = vld [vmem:[#allocation6 + $0x1b0] sm:$0xf]
    %v184 = vld [vmem:[#allocation6 + $0x1b4] sm:$0xf]
    %v185 = vld [vmem:[#allocation6 + $0x1b8] sm:$0xf]
    %v186 = vld [vmem:[#allocation6 + $0x1bc] sm:$0xf]
    %v187 = vld [vmem:[#allocation6 + $0x1c0] sm:$0xf]
    %v188 = vld [vmem:[#allocation6 + $0x1c4] sm:$0xf]
    %v189 = vld [vmem:[#allocation6 + $0x1c8] sm:$0xf]
    %v190 = vld [vmem:[#allocation6 + $0x1cc] sm:$0xf]
    %v191 = vld [vmem:[#allocation6 + $0x1d0] sm:$0xf]
    %v192 = vld [vmem:[#allocation6 + $0x1d4] sm:$0xf]
    %v193 = vld [vmem:[#allocation6 + $0x1d8] sm:$0xf]
    %v194 = vld [vmem:[#allocation6 + $0x1dc] sm:$0xf]
    %v195 = vld [vmem:[#allocation6 + $0x1e0] sm:$0xf]
    %v196 = vld [vmem:[#allocation6 + $0x1e4] sm:$0xf]
    %v197 = vld [vmem:[#allocation6 + $0x1e8] sm:$0xf]
    %v198 = vld [vmem:[#allocation6 + $0x1ec] sm:$0xf]
    %v199 = vld [vmem:[#allocation6 + $0x1f0] sm:$0xf]
    %v200 = vld [vmem:[#allocation6 + $0x1f4] sm:$0xf]
    %v201 = vld [vmem:[#allocation6 + $0x1f8] sm:$0xf]
    %v202 = vld [vmem:[#allocation6 + $0x1fc] sm:$0xf]
    %v203 = vld [vmem:[%s4] sm:$0xff]
    %v204 = vld [vmem:[%s2] sm:$0xff]
    %v205 = vld [vmem:[#allocation8] sm:$0xff]
    %v334 = vunpack.c.l.b16 %v75
    %v335 = vunpack.c.l.b16 %v76
    %v336 = vunpack.c.l.b16 %v77
    %v337 = vunpack.c.l.b16 %v78
    %v338 = vunpack.c.l.b16 %v79
    %v339 = vunpack.c.l.b16 %v80
    %v340 = vunpack.c.l.b16 %v81
    %v341 = vunpack.c.l.b16 %v82
    %v342 = vunpack.c.l.b16 %v83
    %v343 = vunpack.c.l.b16 %v84
    %v344 = vunpack.c.l.b16 %v85
    %v345 = vunpack.c.l.b16 %v86
    %v346 = vunpack.c.l.b16 %v87
    %v347 = vunpack.c.l.b16 %v88
    %v348 = vunpack.c.l.b16 %v89
    %v349 = vunpack.c.l.b16 %v90
    %v350 = vunpack.c.l.b16 %v91
    %v351 = vunpack.c.l.b16 %v92
    %v352 = vunpack.c.l.b16 %v93
    %v353 = vunpack.c.l.b16 %v94
    %v354 = vunpack.c.l.b16 %v95
    %v355 = vunpack.c.l.b16 %v96
    %v356 = vunpack.c.l.b16 %v97
    %v357 = vunpack.c.l.b16 %v98
    %v358 = vunpack.c.l.b16 %v99
    %v359 = vunpack.c.l.b16 %v100
    %v360 = vunpack.c.l.b16 %v101
    %v361 = vunpack.c.l.b16 %v102
    %v362 = vunpack.c.l.b16 %v103
    %v363 = vunpack.c.l.b16 %v104
    %v364 = vunpack.c.l.b16 %v105
    %v365 = vunpack.c.l.b16 %v106
    %v366 = vunpack.c.l.b16 %v107
    %v367 = vunpack.c.l.b16 %v108
    %v368 = vunpack.c.l.b16 %v109
    %v369 = vunpack.c.l.b16 %v110
    %v370 = vunpack.c.l.b16 %v111
    %v371 = vunpack.c.l.b16 %v112
    %v372 = vunpack.c.l.b16 %v113
    %v373 = vunpack.c.l.b16 %v114
    %v374 = vunpack.c.l.b16 %v115
    %v375 = vunpack.c.l.b16 %v116
    %v376 = vunpack.c.l.b16 %v117
    %v377 = vunpack.c.l.b16 %v118
    %v378 = vunpack.c.l.b16 %v119
    %v379 = vunpack.c.l.b16 %v120
    %v380 = vunpack.c.l.b16 %v121
    %v381 = vunpack.c.l.b16 %v122
    %v382 = vunpack.c.l.b16 %v123
    %v383 = vunpack.c.l.b16 %v124
    %v384 = vunpack.c.l.b16 %v125
    %v385 = vunpack.c.l.b16 %v126
    %v386 = vunpack.c.l.b16 %v127
    %v387 = vunpack.c.l.b16 %v128
    %v388 = vunpack.c.l.b16 %v129
    %v389 = vunpack.c.l.b16 %v130
    %v390 = vunpack.c.l.b16 %v131
    %v391 = vunpack.c.l.b16 %v132
    %v392 = vunpack.c.l.b16 %v133
    %v393 = vunpack.c.l.b16 %v134
    %v394 = vunpack.c.l.b16 %v135
    %v395 = vunpack.c.l.b16 %v136
    %v396 = vunpack.c.l.b16 %v137
    %v397 = vunpack.c.l.b16 %v138
    %v398 = vunpack.c.l.b16 %v139
    %v399 = vunpack.c.l.b16 %v140
    %v400 = vunpack.c.l.b16 %v141
    %v401 = vunpack.c.l.b16 %v142
    %v402 = vunpack.c.l.b16 %v143
    %v403 = vunpack.c.l.b16 %v144
    %v404 = vunpack.c.l.b16 %v145
    %v405 = vunpack.c.l.b16 %v146
    %v406 = vunpack.c.l.b16 %v147
    %v407 = vunpack.c.l.b16 %v148
    %v408 = vunpack.c.l.b16 %v149
    %v409 = vunpack.c.l.b16 %v150
    %v410 = vunpack.c.l.b16 %v151
    %v411 = vunpack.c.l.b16 %v152
    %v412 = vunpack.c.l.b16 %v153
    %v413 = vunpack.c.l.b16 %v154
    %v414 = vunpack.c.l.b16 %v155
    %v415 = vunpack.c.l.b16 %v156
    %v416 = vunpack.c.l.b16 %v157
    %v417 = vunpack.c.l.b16 %v158
    %v418 = vunpack.c.l.b16 %v159
    %v419 = vunpack.c.l.b16 %v160
    %v420 = vunpack.c.l.b16 %v161
    %v421 = vunpack.c.l.b16 %v162
    %v422 = vunpack.c.l.b16 %v163
    %v423 = vunpack.c.l.b16 %v164
    %v424 = vunpack.c.l.b16 %v165
    %v425 = vunpack.c.l.b16 %v166
    %v426 = vunpack.c.l.b16 %v167
    %v427 = vunpack.c.l.b16 %v168
    %v428 = vunpack.c.l.b16 %v169
    %v429 = vunpack.c.l.b16 %v170
    %v430 = vunpack.c.l.b16 %v171
    %v431 = vunpack.c.l.b16 %v172
    %v432 = vunpack.c.l.b16 %v173
    %v433 = vunpack.c.l.b16 %v174
    %v434 = vunpack.c.l.b16 %v175
    %v435 = vunpack.c.l.b16 %v176
    %v436 = vunpack.c.l.b16 %v177
    %v437 = vunpack.c.l.b16 %v178
    %v438 = vunpack.c.l.b16 %v179
    %v439 = vunpack.c.l.b16 %v180
    %v440 = vunpack.c.l.b16 %v181
    %v441 = vunpack.c.l.b16 %v182
    %v442 = vunpack.c.l.b16 %v183
    %v443 = vunpack.c.l.b16 %v184
    %v444 = vunpack.c.l.b16 %v185
    %v445 = vunpack.c.l.b16 %v186
    %v446 = vunpack.c.l.b16 %v187
    %v447 = vunpack.c.l.b16 %v188
    %v448 = vunpack.c.l.b16 %v189
    %v449 = vunpack.c.l.b16 %v190
    %v450 = vunpack.c.l.b16 %v191
    %v451 = vunpack.c.l.b16 %v192
    %v452 = vunpack.c.l.b16 %v193
    %v453 = vunpack.c.l.b16 %v194
    %v454 = vunpack.c.l.b16 %v195
    %v455 = vunpack.c.l.b16 %v196
    %v456 = vunpack.c.l.b16 %v197
    %v457 = vunpack.c.l.b16 %v198
    %v458 = vunpack.c.l.b16 %v199
    %v459 = vunpack.c.l.b16 %v200
    %v460 = vunpack.c.l.b16 %v201
    %v461 = vunpack.c.l.b16 %v202
    %v462 = vpack.c.b16 %v335, %v334
    %v463 = vpack.c.b16 %v337, %v336
    %v464 = vpack.c.b16 %v339, %v338
    %v465 = vpack.c.b16 %v341, %v340
    %v466 = vpack.c.b16 %v343, %v342
    %v467 = vpack.c.b16 %v345, %v344
    %v468 = vpack.c.b16 %v347, %v346
    %v469 = vpack.c.b16 %v349, %v348
    %v470 = vpack.c.b16 %v351, %v350
    %v471 = vpack.c.b16 %v353, %v352
    %v472 = vpack.c.b16 %v355, %v354
    %v473 = vpack.c.b16 %v357, %v356
    %v474 = vpack.c.b16 %v359, %v358
    %v475 = vpack.c.b16 %v361, %v360
    %v476 = vpack.c.b16 %v363, %v362
    %v477 = vpack.c.b16 %v365, %v364
    %v478 = vpack.c.b16 %v367, %v366
    %v479 = vpack.c.b16 %v369, %v368
    %v480 = vpack.c.b16 %v371, %v370
    %v481 = vpack.c.b16 %v373, %v372
    %v482 = vpack.c.b16 %v375, %v374
    %v483 = vpack.c.b16 %v377, %v376
    %v484 = vpack.c.b16 %v379, %v378
    %v485 = vpack.c.b16 %v381, %v380
    %v486 = vpack.c.b16 %v383, %v382
    %v487 = vpack.c.b16 %v385, %v384
    %v488 = vpack.c.b16 %v387, %v386
    %v489 = vpack.c.b16 %v389, %v388
    %v490 = vpack.c.b16 %v391, %v390
    %v491 = vpack.c.b16 %v393, %v392
    %v492 = vpack.c.b16 %v395, %v394
    %v493 = vpack.c.b16 %v397, %v396
    %v494 = vpack.c.b16 %v399, %v398
    %v495 = vpack.c.b16 %v401, %v400
    %v496 = vpack.c.b16 %v403, %v402
    %v497 = vpack.c.b16 %v405, %v404
    %v498 = vpack.c.b16 %v407, %v406
    %v499 = vpack.c.b16 %v409, %v408
    %v500 = vpack.c.b16 %v411, %v410
    %v501 = vpack.c.b16 %v413, %v412
    %v502 = vpack.c.b16 %v415, %v414
    %v503 = vpack.c.b16 %v417, %v416
    %v504 = vpack.c.b16 %v419, %v418
    %v505 = vpack.c.b16 %v421, %v420
    %v506 = vpack.c.b16 %v423, %v422
    %v507 = vpack.c.b16 %v425, %v424
    %v508 = vpack.c.b16 %v427, %v426
    %v509 = vpack.c.b16 %v429, %v428
    %v510 = vpack.c.b16 %v431, %v430
    %v511 = vpack.c.b16 %v433, %v432
    %v512 = vpack.c.b16 %v435, %v434
    %v513 = vpack.c.b16 %v437, %v436
    %v514 = vpack.c.b16 %v439, %v438
    %v515 = vpack.c.b16 %v441, %v440
    %v516 = vpack.c.b16 %v443, %v442
    %v517 = vpack.c.b16 %v445, %v444
    %v518 = vpack.c.b16 %v447, %v446
    %v519 = vpack.c.b16 %v449, %v448
    %v520 = vpack.c.b16 %v451, %v450
    %v521 = vpack.c.b16 %v453, %v452
    %v522 = vpack.c.b16 %v455, %v454
    %v523 = vpack.c.b16 %v457, %v456
    %v524 = vpack.c.b16 %v459, %v458
    %v525 = vpack.c.b16 %v461, %v460
    %590 = vmatpush.bf16.xpose.msra.mxu0 %v469
    %591 = vmatpush.bf16.xpose.msra.mxu0 %v468
    %592 = vmatpush.bf16.xpose.msra.mxu0 %v467
    %593 = vmatpush.bf16.xpose.msra.mxu0 %v466
    %594 = vmatpush.bf16.xpose.msra.mxu0 %v465
    %595 = vmatpush.bf16.xpose.msra.mxu0 %v464
    %596 = vmatpush.bf16.xpose.msra.mxu0 %v463
    %597 = vmatpush.bf16.xpose.msra.mxu0 %v462
    %598 = vmatmul.bf16.gmra.mxu0 %v74
    %v599 = vpop.f32.mrf.mxu0
    %v600 = vadd.f32 0.0, %v599
    %v601 = vpop.f32.mrf.mxu0
    %602 = vdwg.mxu0
    %603 = vmatpush.bf16.xpose.msra.mxu0 %v477
    %604 = vmatpush.bf16.xpose.msra.mxu0 %v476
    %605 = vmatpush.bf16.xpose.msra.mxu0 %v475
    %606 = vmatpush.bf16.xpose.msra.mxu0 %v474
    %607 = vmatpush.bf16.xpose.msra.mxu0 %v473
    %608 = vmatpush.bf16.xpose.msra.mxu0 %v472
    %609 = vmatpush.bf16.xpose.msra.mxu0 %v471
    %610 = vmatpush.bf16.xpose.msra.mxu0 %v470
    %611 = vmatmul.bf16.gmra.mxu0 %v74
    %v612 = vpop.f32.mrf.mxu0
    %v613 = vadd.f32 0.0, %v612
    %v614 = vpop.f32.mrf.mxu0
    %615 = vdwg.mxu0
    %616 = vmatpush.bf16.xpose.msra.mxu0 %v485
    %617 = vmatpush.bf16.xpose.msra.mxu0 %v484
    %618 = vmatpush.bf16.xpose.msra.mxu0 %v483
    %619 = vmatpush.bf16.xpose.msra.mxu0 %v482
    %620 = vmatpush.bf16.xpose.msra.mxu0 %v481
    %621 = vmatpush.bf16.xpose.msra.mxu0 %v480
    %622 = vmatpush.bf16.xpose.msra.mxu0 %v479
    %623 = vmatpush.bf16.xpose.msra.mxu0 %v478
    %624 = vmatmul.bf16.gmra.mxu0 %v74
    %v625 = vpop.f32.mrf.mxu0
    %v626 = vadd.f32 0.0, %v625
    %v627 = vpop.f32.mrf.mxu0
    %628 = vdwg.mxu0
    %629 = vmatpush.bf16.xpose.msra.mxu0 %v493
    %630 = vmatpush.bf16.xpose.msra.mxu0 %v492
    %631 = vmatpush.bf16.xpose.msra.mxu0 %v491
    %632 = vmatpush.bf16.xpose.msra.mxu0 %v490
    %633 = vmatpush.bf16.xpose.msra.mxu0 %v489
    %634 = vmatpush.bf16.xpose.msra.mxu0 %v488
    %635 = vmatpush.bf16.xpose.msra.mxu0 %v487
    %636 = vmatpush.bf16.xpose.msra.mxu0 %v486
    %637 = vmatmul.bf16.gmra.mxu0 %v74
    %v638 = vpop.f32.mrf.mxu0
    %v639 = vadd.f32 0.0, %v638
    %v640 = vpop.f32.mrf.mxu0
    %641 = vdwg.mxu0
    %642 = vmatpush.bf16.xpose.msra.mxu0 %v501
    %643 = vmatpush.bf16.xpose.msra.mxu0 %v500
    %644 = vmatpush.bf16.xpose.msra.mxu0 %v499
    %645 = vmatpush.bf16.xpose.msra.mxu0 %v498
    %646 = vmatpush.bf16.xpose.msra.mxu0 %v497
    %647 = vmatpush.bf16.xpose.msra.mxu0 %v496
    %648 = vmatpush.bf16.xpose.msra.mxu0 %v495
    %649 = vmatpush.bf16.xpose.msra.mxu0 %v494
    %650 = vmatmul.bf16.gmra.mxu0 %v74
    %v651 = vpop.f32.mrf.mxu0
    %v652 = vadd.f32 0.0, %v651
    %v653 = vpop.f32.mrf.mxu0
    %654 = vdwg.mxu0
    %655 = vmatpush.bf16.xpose.msra.mxu0 %v509
    %656 = vmatpush.bf16.xpose.msra.mxu0 %v508
    %657 = vmatpush.bf16.xpose.msra.mxu0 %v507
    %658 = vmatpush.bf16.xpose.msra.mxu0 %v506
    %659 = vmatpush.bf16.xpose.msra.mxu0 %v505
    %660 = vmatpush.bf16.xpose.msra.mxu0 %v504
    %661 = vmatpush.bf16.xpose.msra.mxu0 %v503
    %662 = vmatpush.bf16.xpose.msra.mxu0 %v502
    %663 = vmatmul.bf16.gmra.mxu0 %v74
    %v664 = vpop.f32.mrf.mxu0
    %v665 = vadd.f32 0.0, %v664
    %v666 = vpop.f32.mrf.mxu0
    %667 = vdwg.mxu0
    %668 = vmatpush.bf16.xpose.msra.mxu0 %v517
    %669 = vmatpush.bf16.xpose.msra.mxu0 %v516
    %670 = vmatpush.bf16.xpose.msra.mxu0 %v515
    %671 = vmatpush.bf16.xpose.msra.mxu0 %v514
    %672 = vmatpush.bf16.xpose.msra.mxu0 %v513
    %673 = vmatpush.bf16.xpose.msra.mxu0 %v512
    %674 = vmatpush.bf16.xpose.msra.mxu0 %v511
    %675 = vmatpush.bf16.xpose.msra.mxu0 %v510
    %676 = vmatmul.bf16.gmra.mxu0 %v74
    %v677 = vpop.f32.mrf.mxu0
    %v678 = vadd.f32 0.0, %v677
    %v679 = vpop.f32.mrf.mxu0
    %680 = vdwg.mxu0
    %681 = vmatpush.bf16.xpose.msra.mxu0 %v525
    %682 = vmatpush.bf16.xpose.msra.mxu0 %v524
    %683 = vmatpush.bf16.xpose.msra.mxu0 %v523
    %684 = vmatpush.bf16.xpose.msra.mxu0 %v522
    %685 = vmatpush.bf16.xpose.msra.mxu0 %v521
    %686 = vmatpush.bf16.xpose.msra.mxu0 %v520
    %687 = vmatpush.bf16.xpose.msra.mxu0 %v519
    %688 = vmatpush.bf16.xpose.msra.mxu0 %v518
    %689 = vmatmul.bf16.gmra.mxu0 %v74
    %v690 = vpop.f32.mrf.mxu0
    %v691 = vadd.f32 0.0, %v690
    %v692 = vpop.f32.mrf.mxu0
    %693 = vdwg.mxu0
    %v694 = vmul.f32 %v600, 20.0
    %v695 = vmul.f32 %v613, 20.0
    %v696 = vmul.f32 %v626, 20.0
    %v697 = vmul.f32 %v639, 20.0
    %v698 = vmul.f32 %v652, 20.0
    %v699 = vmul.f32 %v665, 20.0
    %v700 = vmul.f32 %v678, 20.0
    %v701 = vmul.f32 %v691, 20.0
    %v703 = vperm.slane %v205, 0
    %v704 = vperm.slane %v205, 1
    %v705 = vperm.slane %v205, 2
    %v706 = vperm.slane %v205, 3
    %v707 = vperm.slane %v205, 4
    %v708 = vperm.slane %v205, 5
    %v709 = vperm.slane %v205, 6
    %v710 = vperm.slane %v205, 7
    %v719 = vadd.f32 %v694, %v703
    %v720 = vadd.f32 %v695, %v704
    %v721 = vadd.f32 %v696, %v705
    %v722 = vadd.f32 %v697, %v706
    %v723 = vadd.f32 %v698, %v707
    %v724 = vadd.f32 %v699, %v708
    %v725 = vadd.f32 %v700, %v709
    %v726 = vadd.f32 %v701, %v710
    %v727 = vperm.slane %v204, 0
    %v728 = vperm.slane %v204, 1
    %v729 = vperm.slane %v204, 2
    %v730 = vperm.slane %v204, 3
    %v731 = vperm.slane %v204, 4
    %v732 = vperm.slane %v204, 5
    %v733 = vperm.slane %v204, 6
    %v734 = vperm.slane %v204, 7
    %735 = vset.pattern.permute.xlu0 0
    %736 = vperm.xlu0 %735, %v203
    %v737 = vpop.permute.xlu0 %736
    %vm738 = vcmp.eq.s32.totalorder %v727, %v737
    %vm739 = vcmp.eq.s32.totalorder %v728, %v737
    %vm740 = vcmp.eq.s32.totalorder %v729, %v737
    %vm741 = vcmp.eq.s32.totalorder %v730, %v737
    %vm742 = vcmp.eq.s32.totalorder %v731, %v737
    %vm743 = vcmp.eq.s32.totalorder %v732, %v737
    %vm744 = vcmp.eq.s32.totalorder %v733, %v737
    %vm745 = vcmp.eq.s32.totalorder %v734, %v737
    %v746 = vld [vmem:[#allocation2] sm:$0xff]
    %v747 = vsel %vm738, %v719, 0.0
    %v748 = vsel %vm739, %v720, 0.0
    %v749 = vsel %vm740, %v721, 0.0
    %v750 = vsel %vm741, %v722, 0.0
    %v751 = vsel %vm742, %v723, 0.0
    %v752 = vsel %vm743, %v724, 0.0
    %v753 = vsel %vm744, %v725, 0.0
    %v754 = vsel %vm745, %v726, 0.0
    %v755 = vadd.f32 %v747, %v748
    %v756 = vadd.f32 %v755, %v749
    %v757 = vadd.f32 %v756, %v750
    %v758 = vadd.f32 %v757, %v751
    %v759 = vadd.f32 %v758, %v752
    %v760 = vadd.f32 %v759, %v753
    %v761 = vadd.f32 %v760, %v754
    %762 = vadd.xlane.f32.xlu0 %v761
    %v763 = vpop.xlane.xlu0 %762
    %v764 = vadd.f32 %v746, %v763
    %v765 = vld [vmem:[#allocation3] sm:$0xff]
    %v766 = vlaneseq
    %v767 = vand.u32 %v766, 127
    %vm768 = vcmp.lt.s32.totalorder %v767, 6
    %v769 = vmax.f32 %v719, %v723
    %v770 = vmax.f32 %v720, %v724
    %v771 = vmax.f32 %v721, %v725
    %v772 = vmax.f32 %v722, %v726
    %v773 = vmax.f32 %v769, %v770
    %v774 = vmax.f32 %v771, %v772
    %v775 = vmax.f32 %v773, %v774
    %776 = vmax.xlane.f32.xlu0 %v775
    %v777 = vpop.xlane.xlu0 %776
    %v778 = vsel %vm768, %v765, inf
    %779 = vmin.xlane.f32.xlu0 %v778
    %v780 = vpop.xlane.xlu0 %779
    %vm781 = vcmp.eq.f32.partialorder %v765, %v780
    %vm782 = vmand %vm768, %vm781
    %v783 = vsel %vm782, %v767, 128
    %v784 = vand.u32 %v783, 65535
    %v785 = vshra.s32 %v783, 16
    %v786 = vcvt.s32.f32 %v784
    %v787 = vcvt.s32.f32 %v785
    %788 = vmin.xlane.f32.xlu0 %v787
    %v789 = vpop.xlane.xlu0 %788
    %vm790 = vcmp.eq.f32.partialorder %v787, %v789
    %v791 = vsel %vm790, %v786, inf
    %792 = vmin.xlane.f32.xlu0 %v791
    %v793 = vpop.xlane.xlu0 %792
    %v794 = vcvt.f32.s32 %v793
    %v795 = vcvt.f32.s32 %v789
    %v796 = vshll.u32 %v795, 16
    %v797 = vadd.s32 %v796, %v794
    %vm798 = vcmp.eq.s32.totalorder %v767, %v797
    %vm799 = vcmp.gt.f32.partialorder %v777, %v780
    %v800 = vsel %vm799, 1, 0
    %vm801 = vcmp.eq.s32.totalorder %v800, 1
    %vm802 = vmand %vm798, %vm801
    %v803 = vsel %vm802, %v777, %v765
    %vm804 = vcmp.lt.f32.partialorder %v719, %v777
    %vm805 = vcmp.lt.f32.partialorder %v720, %v777
    %vm806 = vcmp.lt.f32.partialorder %v721, %v777
    %vm807 = vcmp.lt.f32.partialorder %v722, %v777
    %vm808 = vcmp.lt.f32.partialorder %v723, %v777
    %vm809 = vcmp.lt.f32.partialorder %v724, %v777
    %vm810 = vcmp.lt.f32.partialorder %v725, %v777
    %vm811 = vcmp.lt.f32.partialorder %v726, %v777
    %v812 = vsel %vm804, %v719, -inf
    %v813 = vsel %vm805, %v720, -inf
    %v814 = vsel %vm806, %v721, -inf
    %v815 = vsel %vm807, %v722, -inf
    %v816 = vsel %vm808, %v723, -inf
    %v817 = vsel %vm809, %v724, -inf
    %v818 = vsel %vm810, %v725, -inf
    %v819 = vsel %vm811, %v726, -inf
    %v820 = vmax.f32 %v812, %v816
    %v821 = vmax.f32 %v813, %v817
    %v822 = vmax.f32 %v814, %v818
    %v823 = vmax.f32 %v815, %v819
    %v824 = vmax.f32 %v820, %v821
    %v825 = vmax.f32 %v822, %v823
    %v826 = vmax.f32 %v824, %v825
    %827 = vmax.xlane.f32.xlu0 %v826
    %v828 = vpop.xlane.xlu0 %827
    %v829 = vsel %vm768, %v803, inf
    %830 = vmin.xlane.f32.xlu0 %v829
    %v831 = vpop.xlane.xlu0 %830
    %vm832 = vcmp.eq.f32.partialorder %v803, %v831
    %vm833 = vmand %vm768, %vm832
    %v834 = vsel %vm833, %v767, 128
    %v835 = vand.u32 %v834, 65535
    %v836 = vshra.s32 %v834, 16
    %v837 = vcvt.s32.f32 %v835
    %v838 = vcvt.s32.f32 %v836
    %839 = vmin.xlane.f32.xlu0 %v838
    %v840 = vpop.xlane.xlu0 %839
    %vm841 = vcmp.eq.f32.partialorder %v838, %v840
    %v842 = vsel %vm841, %v837, inf
    %843 = vmin.xlane.f32.xlu0 %v842
    %v844 = vpop.xlane.xlu0 %843
    %v845 = vcvt.f32.s32 %v844
    %v846 = vcvt.f32.s32 %v840
    %v847 = vshll.u32 %v846, 16
    %v848 = vadd.s32 %v847, %v845
    %vm849 = vcmp.eq.s32.totalorder %v767, %v848
    %vm850 = vcmp.gt.f32.partialorder %v828, %v831
    %v851 = vsel %vm850, 1, 0
    %vm852 = vcmp.eq.s32.totalorder %v851, 1
    %vm853 = vmand %vm849, %vm852
    %v854 = vsel %vm853, %v828, %v803
    %vm855 = vcmp.lt.f32.partialorder %v719, %v828
    %vm856 = vcmp.lt.f32.partialorder %v720, %v828
    %vm857 = vcmp.lt.f32.partialorder %v721, %v828
    %vm858 = vcmp.lt.f32.partialorder %v722, %v828
    %vm859 = vcmp.lt.f32.partialorder %v723, %v828
    %vm860 = vcmp.lt.f32.partialorder %v724, %v828
    %vm861 = vcmp.lt.f32.partialorder %v725, %v828
    %vm862 = vcmp.lt.f32.partialorder %v726, %v828
    %v863 = vsel %vm855, %v719, -inf
    %v864 = vsel %vm856, %v720, -inf
    %v865 = vsel %vm857, %v721, -inf
    %v866 = vsel %vm858, %v722, -inf
    %v867 = vsel %vm859, %v723, -inf
    %v868 = vsel %vm860, %v724, -inf
    %v869 = vsel %vm861, %v725, -inf
    %v870 = vsel %vm862, %v726, -inf
    %v871 = vmax.f32 %v863, %v867
    %v872 = vmax.f32 %v864, %v868
    %v873 = vmax.f32 %v865, %v869
    %v874 = vmax.f32 %v866, %v870
    %v875 = vmax.f32 %v871, %v872
    %v876 = vmax.f32 %v873, %v874
    %v877 = vmax.f32 %v875, %v876
    %878 = vmax.xlane.f32.xlu0 %v877
    %v879 = vpop.xlane.xlu0 %878
    %v880 = vsel %vm768, %v854, inf
    %881 = vmin.xlane.f32.xlu0 %v880
    %v882 = vpop.xlane.xlu0 %881
    %vm883 = vcmp.eq.f32.partialorder %v854, %v882
    %vm884 = vmand %vm768, %vm883
    %v885 = vsel %vm884, %v767, 128
    %v886 = vand.u32 %v885, 65535
    %v887 = vshra.s32 %v885, 16
    %v888 = vcvt.s32.f32 %v886
    %v889 = vcvt.s32.f32 %v887
    %890 = vmin.xlane.f32.xlu0 %v889
    %v891 = vpop.xlane.xlu0 %890
    %vm892 = vcmp.eq.f32.partialorder %v889, %v891
    %v893 = vsel %vm892, %v888, inf
    %894 = vmin.xlane.f32.xlu0 %v893
    %v895 = vpop.xlane.xlu0 %894
    %v896 = vcvt.f32.s32 %v895
    %v897 = vcvt.f32.s32 %v891
    %v898 = vshll.u32 %v897, 16
    %v899 = vadd.s32 %v898, %v896
    %vm900 = vcmp.eq.s32.totalorder %v767, %v899
    %vm901 = vcmp.gt.f32.partialorder %v879, %v882
    %v902 = vsel %vm901, 1, 0
    %vm903 = vcmp.eq.s32.totalorder %v902, 1
    %vm904 = vmand %vm900, %vm903
    %v905 = vsel %vm904, %v879, %v854
    %vm906 = vcmp.lt.f32.partialorder %v719, %v879
    %vm907 = vcmp.lt.f32.partialorder %v720, %v879
    %vm908 = vcmp.lt.f32.partialorder %v721, %v879
    %vm909 = vcmp.lt.f32.partialorder %v722, %v879
    %vm910 = vcmp.lt.f32.partialorder %v723, %v879
    %vm911 = vcmp.lt.f32.partialorder %v724, %v879
    %vm912 = vcmp.lt.f32.partialorder %v725, %v879
    %vm913 = vcmp.lt.f32.partialorder %v726, %v879
    %v914 = vsel %vm906, %v719, -inf
    %v915 = vsel %vm907, %v720, -inf
    %v916 = vsel %vm908, %v721, -inf
    %v917 = vsel %vm909, %v722, -inf
    %v918 = vsel %vm910, %v723, -inf
    %v919 = vsel %vm911, %v724, -inf
    %v920 = vsel %vm912, %v725, -inf
    %v921 = vsel %vm913, %v726, -inf
    %v922 = vmax.f32 %v914, %v918
    %v923 = vmax.f32 %v915, %v919
    %v924 = vmax.f32 %v916, %v920
    %v925 = vmax.f32 %v917, %v921
    %v926 = vmax.f32 %v922, %v923
    %v927 = vmax.f32 %v924, %v925
    %v928 = vmax.f32 %v926, %v927
    %929 = vmax.xlane.f32.xlu0 %v928
    %v930 = vpop.xlane.xlu0 %929
    %v931 = vsel %vm768, %v905, inf
    %932 = vmin.xlane.f32.xlu0 %v931
    %v933 = vpop.xlane.xlu0 %932
    %vm934 = vcmp.eq.f32.partialorder %v905, %v933
    %vm935 = vmand %vm768, %vm934
    %v936 = vsel %vm935, %v767, 128
    %v937 = vand.u32 %v936, 65535
    %v938 = vshra.s32 %v936, 16
    %v939 = vcvt.s32.f32 %v937
    %v940 = vcvt.s32.f32 %v938
    %941 = vmin.xlane.f32.xlu0 %v940
    %v942 = vpop.xlane.xlu0 %941
    %vm943 = vcmp.eq.f32.partialorder %v940, %v942
    %v944 = vsel %vm943, %v939, inf
    %945 = vmin.xlane.f32.xlu0 %v944
    %v946 = vpop.xlane.xlu0 %945
    %v947 = vcvt.f32.s32 %v946
    %v948 = vcvt.f32.s32 %v942
    %v949 = vshll.u32 %v948, 16
    %v950 = vadd.s32 %v949, %v947
    %vm951 = vcmp.eq.s32.totalorder %v767, %v950
    %vm952 = vcmp.gt.f32.partialorder %v930, %v933
    %v953 = vsel %vm952, 1, 0
    %vm954 = vcmp.eq.s32.totalorder %v953, 1
    %vm955 = vmand %vm951, %vm954
    %v956 = vsel %vm955, %v930, %v905
    %vm957 = vcmp.lt.f32.partialorder %v719, %v930
    %vm958 = vcmp.lt.f32.partialorder %v720, %v930
    %vm959 = vcmp.lt.f32.partialorder %v721, %v930
    %vm960 = vcmp.lt.f32.partialorder %v722, %v930
    %vm961 = vcmp.lt.f32.partialorder %v723, %v930
    %vm962 = vcmp.lt.f32.partialorder %v724, %v930
    %vm963 = vcmp.lt.f32.partialorder %v725, %v930
    %vm964 = vcmp.lt.f32.partialorder %v726, %v930
    %v965 = vsel %vm957, %v719, -inf
    %v966 = vsel %vm958, %v720, -inf
    %v967 = vsel %vm959, %v721, -inf
    %v968 = vsel %vm960, %v722, -inf
    %v969 = vsel %vm961, %v723, -inf
    %v970 = vsel %vm962, %v724, -inf
    %v971 = vsel %vm963, %v725, -inf
    %v972 = vsel %vm964, %v726, -inf
    %v973 = vmax.f32 %v965, %v969
    %v974 = vmax.f32 %v966, %v970
    %v975 = vmax.f32 %v967, %v971
    %v976 = vmax.f32 %v968, %v972
    %v977 = vmax.f32 %v973, %v974
    %v978 = vmax.f32 %v975, %v976
    %v979 = vmax.f32 %v977, %v978
    %980 = vmax.xlane.f32.xlu0 %v979
    %v981 = vpop.xlane.xlu0 %980
    %v982 = vsel %vm768, %v956, inf
    %983 = vmin.xlane.f32.xlu0 %v982
    %v984 = vpop.xlane.xlu0 %983
    %vm985 = vcmp.eq.f32.partialorder %v956, %v984
    %vm986 = vmand %vm768, %vm985
    %v987 = vsel %vm986, %v767, 128
    %v988 = vand.u32 %v987, 65535
    %v989 = vshra.s32 %v987, 16
    %v990 = vcvt.s32.f32 %v988
    %v991 = vcvt.s32.f32 %v989
    %992 = vmin.xlane.f32.xlu0 %v991
    %v993 = vpop.xlane.xlu0 %992
    %vm994 = vcmp.eq.f32.partialorder %v991, %v993
    %v995 = vsel %vm994, %v990, inf
    %996 = vmin.xlane.f32.xlu0 %v995
    %v997 = vpop.xlane.xlu0 %996
    %v998 = vcvt.f32.s32 %v997
    %v999 = vcvt.f32.s32 %v993
    %v1000 = vshll.u32 %v999, 16
    %v1001 = vadd.s32 %v1000, %v998
    %vm1002 = vcmp.eq.s32.totalorder %v767, %v1001
    %vm1003 = vcmp.gt.f32.partialorder %v981, %v984
    %v1004 = vsel %vm1003, 1, 0
    %vm1005 = vcmp.eq.s32.totalorder %v1004, 1
    %vm1006 = vmand %vm1002, %vm1005
    %v1007 = vsel %vm1006, %v981, %v956
    %vm1008 = vcmp.lt.f32.partialorder %v719, %v981
    %vm1009 = vcmp.lt.f32.partialorder %v720, %v981
    %vm1010 = vcmp.lt.f32.partialorder %v721, %v981
    %vm1011 = vcmp.lt.f32.partialorder %v722, %v981
    %vm1012 = vcmp.lt.f32.partialorder %v723, %v981
    %vm1013 = vcmp.lt.f32.partialorder %v724, %v981
    %vm1014 = vcmp.lt.f32.partialorder %v725, %v981
    %vm1015 = vcmp.lt.f32.partialorder %v726, %v981
    %v1016 = vsel %vm1008, %v719, -inf
    %v1017 = vsel %vm1009, %v720, -inf
    %v1018 = vsel %vm1010, %v721, -inf
    %v1019 = vsel %vm1011, %v722, -inf
    %v1020 = vsel %vm1012, %v723, -inf
    %v1021 = vsel %vm1013, %v724, -inf
    %v1022 = vsel %vm1014, %v725, -inf
    %v1023 = vsel %vm1015, %v726, -inf
    %v1024 = vmax.f32 %v1016, %v1020
    %v1025 = vmax.f32 %v1017, %v1021
    %v1026 = vmax.f32 %v1018, %v1022
    %v1027 = vmax.f32 %v1019, %v1023
    %v1028 = vmax.f32 %v1024, %v1025
    %v1029 = vmax.f32 %v1026, %v1027
    %v1030 = vmax.f32 %v1028, %v1029
    %1031 = vmax.xlane.f32.xlu0 %v1030
    %v1032 = vpop.xlane.xlu0 %1031
    %v1033 = vsel %vm768, %v1007, inf
    %1034 = vmin.xlane.f32.xlu0 %v1033
    %v1035 = vpop.xlane.xlu0 %1034
    %vm1036 = vcmp.eq.f32.partialorder %v1007, %v1035
    %vm1037 = vmand %vm768, %vm1036
    %v1038 = vsel %vm1037, %v767, 128
    %v1039 = vand.u32 %v1038, 65535
    %v1040 = vshra.s32 %v1038, 16
    %v1041 = vcvt.s32.f32 %v1039
    %v1042 = vcvt.s32.f32 %v1040
    %1043 = vmin.xlane.f32.xlu0 %v1042
    %v1044 = vpop.xlane.xlu0 %1043
    %vm1045 = vcmp.eq.f32.partialorder %v1042, %v1044
    %v1046 = vsel %vm1045, %v1041, inf
    %1047 = vmin.xlane.f32.xlu0 %v1046
    %v1048 = vpop.xlane.xlu0 %1047
    %v1049 = vcvt.f32.s32 %v1048
    %v1050 = vcvt.f32.s32 %v1044
    %v1051 = vshll.u32 %v1050, 16
    %v1052 = vadd.s32 %v1051, %v1049
    %vm1053 = vcmp.eq.s32.totalorder %v767, %v1052
    %vm1054 = vcmp.gt.f32.partialorder %v1032, %v1035
    %v1055 = vsel %vm1054, 1, 0
    %vm1056 = vcmp.eq.s32.totalorder %v1055, 1
    %vm1057 = vmand %vm1053, %vm1056
    %v1058 = vsel %vm1057, %v1032, %v1007
    %1059 = vst [vmem:[#allocation3] sm:$0xff] %v1058
    %v1060 = vld [vmem:[#allocation2] sm:$0xff]
    %v1061 = vmax.f32 %v1060, %v777
    %v1062 = vsub.f32 %v1060, %v1061
    %v1063 = vmul.f32 %v1062, 1.442695
    %v1064 = vpow.pop %v1063
    %1066 = vrot.lane.b32.xlu0 %v1064, 1
    %v1067 = vpop.permute.xlu0 %1066
    %v1069 = vmul.f32 %v1060, %v1067
    %1071 = vset.pattern.permute.xlu0 0
    %1072 = vperm.xlu0 %1071, %v1061
    %v1073 = vpop.permute.xlu0 %1072
    %v1075 = vsub.f32 %v719, %v1073
    %v1076 = vsub.f32 %v720, %v1073
    %v1077 = vsub.f32 %v721, %v1073
    %v1078 = vsub.f32 %v722, %v1073
    %v1079 = vsub.f32 %v723, %v1073
    %v1080 = vsub.f32 %v724, %v1073
    %v1081 = vsub.f32 %v725, %v1073
    %v1082 = vsub.f32 %v726, %v1073
    %v1083 = vmul.f32 %v1075, 1.442695
    %v1084 = vpow.pop %v1083
    %v1085 = vmul.f32 %v1076, 1.442695
    %v1086 = vpow.pop %v1085
    %v1087 = vmul.f32 %v1077, 1.442695
    %v1088 = vpow.pop %v1087
    %v1089 = vmul.f32 %v1078, 1.442695
    %v1090 = vpow.pop %v1089
    %v1091 = vmul.f32 %v1079, 1.442695
    %v1092 = vpow.pop %v1091
    %v1093 = vmul.f32 %v1080, 1.442695
    %v1094 = vpow.pop %v1093
    %v1095 = vmul.f32 %v1081, 1.442695
    %v1096 = vpow.pop %v1095
    %v1097 = vmul.f32 %v1082, 1.442695
    %v1098 = vpow.pop %v1097
    %v1099 = vadd.f32 %v1084, %v1086
    %v1100 = vadd.f32 %v1099, %v1088
    %v1101 = vadd.f32 %v1100, %v1090
    %v1102 = vadd.f32 %v1101, %v1092
    %v1103 = vadd.f32 %v1102, %v1094
    %v1104 = vadd.f32 %v1103, %v1096
    %v1105 = vadd.f32 %v1104, %v1098
    %1106 = vadd.xlane.f32.xlu0 %v1105
    %v1107 = vpop.xlane.xlu0 %1106
    %v1108 = vadd.f32 %v1069, %v1107
    %vm1109 = vcmask 7168
    %1110 = vst.msk [vmem:[#allocation2] sm:$0xff] %vm1109, %v1061
    %vm1111 = vcmask 15368
    %1112 = vst.msk [vmem:[#allocation2] sm:$0xff] %vm1111, %v1108
    %vm1113 = vcmask 23568
    %1114 = vst.msk [vmem:[#allocation2] sm:$0xff] %vm1113, %v764
    // Predicated region
    $region38: #{tpu_custom_call.1} parent=1 // pred_check
      %p1115 = pneg %p63
    $region39: #{tpu_custom_call.1} parent=1 // pred_check_branch
      %1117 = sbr.rel (%p1115) target = $region41
    $region40: #{tpu_custom_call.1} parent=1 // pred_region
      %v1118 = vld [vmem:[#allocation2] sm:$0xff]
      %v1119 = vlog2.pop %v1118
      %v1120 = vmul.f32 %v1119, 0.6931472
      %1122 = vrot.lane.b32.xlu0 %v1120, 127
      %v1123 = vpop.permute.xlu0 %1122
      %v1125 = vadd.f32 %v1118, %v1123
      %1127 = vrot.lane.b32.xlu0 %v1125, 2
      %v1128 = vpop.permute.xlu0 %1127
      %v1130 = vsub.f32 %v1118, %v1128
      %v1131 = vld [vmem:[#allocation3] sm:$0xff]
      %v1132 = vsel %vm768, %v1131, 0.0
      %1133 = vadd.xlane.f32.xlu0 %v1132
      %v1134 = vpop.xlane.xlu0 %1133
      %v1135 = vsel %vm768, %v1131, inf
      %1136 = vmin.xlane.f32.xlu0 %v1135
      %v1137 = vpop.xlane.xlu0 %1136
      %vm1138 = vcmp.ge.f32.partialorder %v1118, %v1137
      %v1139 = vsel %vm1138, 1, 0
      %v1140 = vcvt.s32.f32 %v1139
      %v1141 = vmul.f32 %v1125, 6.0
      %v1142 = vsub.f32 %v1134, %v1141
      %v1143 = vmul.f32 %v1140, %v1130
      %1145 = vrot.lane.b32.xlu0 %v1143, 126
      %v1146 = vpop.permute.xlu0 %1145
      %v1148 = vsub.f32 %v1142, %v1146
      %v1149 = vmul.f32 %v1148, 0.16666667
      %1151 = vrot.lane.b32.xlu0 %v1130, 126
      %v1152 = vpop.permute.xlu0 %1151
      %v1154 = vadd.f32 %v1149, %v1152
      %v1155 = vsub.f32 0.0, %v1154
      %1156 = vst.msk [vmem:[%s5] sm:$0xff] %vm1109, %v1155
    $region41: #{tpu_custom_call.1} parent=1 // pred_fallthru
      _
    // Predicated region
    $region42: #{tpu_custom_call.1} parent=1 // pred_check
      _
    $region43: #{tpu_custom_call.1} parent=1 // pred_check_branch
      %1158 = sbr.rel (0) target = $region45
    $region44: #{tpu_custom_call.1} parent=1 // pred_region
      _
    $region45: #{tpu_custom_call.1} parent=1 // pred_fallthru
      _
    // Predicated region
    $region46: #{tpu_custom_call.1} parent=1 // pred_check
      _
    $region47: #{tpu_custom_call.1} parent=1 // pred_check_branch
      %1160 = sbr.rel (0) target = $region49
    $region48: #{tpu_custom_call.1} parent=1 // pred_region
      _
    $region49: #{tpu_custom_call.1} parent=1 // pred_fallthru
      _
    %1161 = vsyncpa [#allocation5], 1
    %1162 = vsyncpa [#allocation7], 1

</llo_original>
